<compile_context>
chip_gen: v7x
topology: tpu7x:2x2x1
jax: 0.10.0
libtpu: 0.0.40
codegen_flags: <defaults>
</compile_context>

<pallas_src>
import functools
import math

import jax
import jax.numpy as jnp
import numpy as np
from jax import lax
from jax.experimental import pallas as pl
from jax.experimental.pallas import tpu as pltpu

# sentinel for padded rows: its intensity bin is out of range, so the one-hot
# is all-zero there == the conv's zero padding (and rgb * onehot == 0 exactly)
_PAD_VAL = -512.0


def _pixel_effect_kernel(x_ref, m_ref, eh_ref, ew_ref, out_ref, y_ref, *,
                         num_bins, ksize, ps, block_ho, block_h_in, npb):
    nb = num_bins
    W = x_ref.shape[2]
    wo = m_ref.shape[1]
    f32 = jnp.float32

    x = x_ref[...]                                        # [3, block_h_in, W]
    mean = jnp.mean(x, axis=0)                            # [block_h_in, W]
    idx = (mean / 256.0 * nb).astype(jnp.int32)           # trunc, like torch .long()

    # one-hot intensity mask, bins folded onto the row axis
    z_iota = lax.broadcasted_iota(jnp.int32, (nb, block_h_in, W), 0)
    oh = (z_iota == idx[None, :, :]).astype(f32)          # [nb, block_h_in, W]

    rows_in = nb * block_h_in
    slab = jnp.concatenate(
        [(x[0][None, :, :] * oh).reshape(rows_in, W),
         (x[1][None, :, :] * oh).reshape(rows_in, W),
         (x[2][None, :, :] * oh).reshape(rows_in, W),
         oh.reshape(rows_in, W)],
        axis=0)                                           # [4*nb*block_h_in, W]

    # column box-sum (incl. left/right zero padding) as ONE lane-contraction matmul
    y = jnp.dot(slab, m_ref[...], preferred_element_type=f32)   # [4*rows_in, wo]
    y_ref[0:4 * rows_in, :] = y
    if y_ref.shape[0] > 4 * rows_in:                      # tail only exists if ksize > ps
        y_ref[4 * rows_in:, :] = jnp.zeros((y_ref.shape[0] - 4 * rows_in, wo), f32)

    # row box-sum: window = local rows [i*ps, i*ps + ksize); ksize strided reads + adds
    n_str = 4 * nb * npb
    acc = y_ref[pl.ds(0, n_str, stride=ps), :]
    for d in range(1, ksize):
        acc = acc + y_ref[pl.ds(d, n_str, stride=ps), :]
    # acc rows are ordered (q, z, i) with q in {r, g, b, count}, i in [0, npb)

    def blk(q, z):                                        # -> [block_ho, wo]
        s = (q * nb + z) * npb
        return acc[s:s + block_ho, :]

    # online max / first-argmax / select over the bin axis
    best_c = blk(3, 0)
    best_r, best_g, best_b = blk(0, 0), blk(1, 0), blk(2, 0)
    for z in range(1, nb):
        c = blk(3, z)
        take = c > best_c                                 # strict > keeps the first argmax
        best_r = jnp.where(take, blk(0, z), best_r)
        best_g = jnp.where(take, blk(1, z), best_g)
        best_b = jnp.where(take, blk(2, z), best_b)
        best_c = jnp.where(take, c, best_c)

    # one reciprocal; all-padding windows (only in rows that get cropped) give 0, not NaN
    inv = pl.reciprocal(jnp.where(best_c > 0.0, best_c, 1.0), approx=False)
    res3 = jnp.concatenate([best_r * inv, best_g * inv, best_b * inv],
                           axis=0)                        # [3*block_ho, wo]

    # nearest-neighbour upsample, 3 channels folded on rows, lane-padded output
    t = jnp.dot(res3, ew_ref[...], preferred_element_type=f32)   # [3*block_ho, Wpad]
    up = jnp.dot(eh_ref[...], t, preferred_element_type=f32)     # [3*block_ho*ps, Wpad]
    out_ref[...] = up.reshape(3, block_ho * ps, ew_ref.shape[1])


def _round_up(x, m):
    return ((x + m - 1) // m) * m


def pixel_effect_pallas(rgb, param_num_bins, param_kernel_size, param_pixel_size,
                        *, block_ho=None):
    """rgb: [1, 3, H, W] float32 (NCHW, like the PyTorch module). Returns NCHW."""
    assert rgb.ndim == 4 and rgb.shape[0] == 1 and rgb.shape[1] == 3
    _, _, H, W = rgb.shape
    nb, ksize, ps = param_num_bins, param_kernel_size, param_pixel_size
    pad = (ksize - 1) // 2
    Ho = (H + 2 * pad - ksize) // ps + 1
    Wo = (W + 2 * pad - ksize) // ps + 1
    out_h, out_w = Ho * ps, Wo * ps

    # ---- row tiling -------------------------------------------------------
    base = 8 // math.gcd(ps, 8)          # smallest block_ho with block_ho*ps % 8 == 0
    if ksize <= ps:
        if block_ho is None:
            block_ho = base
            # grow the tile while the per-tile working set stays modest (~6 MiB)
            while block_ho < Ho and \
                    (2 * block_ho) * ps * W * 4 * (5 * nb + 8) <= (6 << 20):
                block_ho *= 2
        else:
            assert block_ho > 0 and (block_ho * ps) % 8 == 0
        block_h_in = block_ho * ps
    else:
        # TODO(synk): halo'd row tiles for kernel_size > pixel_size; use one row tile.
        block_ho = Ho
        lcm = ps * 8 // math.gcd(ps, 8)
        block_h_in = _round_up((Ho - 1) * ps + ksize, lcm)
    npb = block_h_in // ps
    n_tiles = -(-Ho // block_ho)
    block_hup = block_ho * ps
    w_pad = _round_up(max(out_w, 1), 128)        # lane-dense (unmasked) output stores

    # ---- pre-padded input (rows only; sentinel rows act like zero padding) --
    hp_total = _round_up(max(pad + H, n_tiles * block_h_in), block_h_in)
    rgb_chw = rgb[0].astype(jnp.float32)
    rgb_pad = jnp.pad(rgb_chw, ((0, 0), (pad, hp_total - pad - H), (0, 0)),
                      constant_values=_PAD_VAL)

    # ---- grid-invariant 0/1 structure matrices (hoisted, built host-side) ---
    m_np = np.zeros((W, Wo), np.float32)         # column box window (handles L/R zero pad)
    for j in range(Wo):
        lo = j * ps - pad
        m_np[max(lo, 0):min(lo + ksize, W), j] = 1.0
    eh_np = np.zeros((3 * block_hup, 3 * block_ho), np.float32)  # row repeat, 3 ch folded
    for u in range(3 * block_hup):
        c, r = divmod(u, block_hup)
        eh_np[u, c * block_ho + r // ps] = 1.0
    ew_np = np.zeros((Wo, w_pad), np.float32)    # lane repeat + zero pad to 128 lanes
    for j in range(out_w):
        ew_np[j // ps, j] = 1.0

    scratch_rows = _round_up(4 * nb * block_h_in + max(0, ksize - ps), 8)

    kern = functools.partial(
        _pixel_effect_kernel, num_bins=nb, ksize=ksize, ps=ps,
        block_ho=block_ho, block_h_in=block_h_in, npb=npb)

    out = pl.pallas_call(
        kern,
        out_shape=jax.ShapeDtypeStruct((3, n_tiles * block_hup, w_pad), jnp.float32),
        grid=(n_tiles,),
        in_specs=[
            pl.BlockSpec((3, block_h_in, W), lambda t: (0, t, 0)),
            pl.BlockSpec((W, Wo), lambda t: (0, 0)),
            pl.BlockSpec((3 * block_hup, 3 * block_ho), lambda t: (0, 0)),
            pl.BlockSpec((Wo, w_pad), lambda t: (0, 0)),
        ],
        out_specs=pl.BlockSpec((3, block_hup, w_pad), lambda t: (0, t, 0)),
        scratch_shapes=[pltpu.VMEM((scratch_rows, Wo), jnp.float32)],
        compiler_params=pltpu.CompilerParams(
            dimension_semantics=("parallel",),
            vmem_limit_bytes=32 * 1024 * 1024),
    )(rgb_pad, jnp.asarray(m_np), jnp.asarray(eh_np), jnp.asarray(ew_np))

    return out[None, :, :out_h, :out_w]                  # [1, 3, Ho*ps, Wo*ps]


def pixel_effect_ref(rgb, param_num_bins, param_kernel_size, param_pixel_size):
    """Pure-JAX reference reproducing the PyTorch forward step-by-step."""
    pad = (param_kernel_size - 1) // 2
    x = rgb[0]                                           # [3, H, W]
    mean = jnp.mean(x, axis=0)
    idx = (mean / 256.0 * param_num_bins).astype(jnp.int32)
    onehot = jax.nn.one_hot(idx, param_num_bins, dtype=jnp.float32)  # [H, W, nb]
    intensity = jnp.transpose(onehot, (2, 0, 1))[None]   # [1, nb, H, W]
    r = x[0][None, None] * intensity
    g = x[1][None, None] * intensity
    b = x[2][None, None] * intensity
    w = jnp.ones((param_num_bins, 1, param_kernel_size, param_kernel_size), jnp.float32)

    def conv(a):
        return lax.conv_general_dilated(
            a, w, window_strides=(param_pixel_size, param_pixel_size),
            padding=[(pad, pad), (pad, pad)],
            feature_group_count=param_num_bins,
            dimension_numbers=("NCHW", "OIHW", "NCHW"))[0]

    rc, gc, bc, ic = conv(r), conv(g), conv(b), conv(intensity)
    i_max = jnp.max(ic, axis=0)
    i_arg = jnp.argmax(ic, axis=0)

    def sel(a):
        ahwc = jnp.transpose(a, (1, 2, 0))
        return jnp.take_along_axis(ahwc, i_arg[..., None], axis=-1)[..., 0]

    rs = sel(rc) / i_max
    gs = sel(gc) / i_max
    bs = sel(bc) / i_max
    res = jnp.stack([rs, gs, bs], axis=0)
    up = jnp.repeat(jnp.repeat(res, param_pixel_size, axis=1), param_pixel_size, axis=2)
    return up[None]


if __name__ == "__main__":
    key = jax.random.PRNGKey(0)
    H = W = 16
    # rgb values in [0, 255) so intensity_idx < num_bins (as the torch module assumes)
    rgb = jax.random.uniform(key, (1, 3, H, W), jnp.float32, 0.0, 255.0)

    configs = [
        # (num_bins, kernel_size, pixel_size, forced block_ho)
        (8, 3, 4, None),   # default tiling (single row tile)
        (8, 3, 4, 2),      # forced 2 output rows / tile -> exercises the 2-tile grid
        (8, 5, 4, None),   # kernel_size > pixel_size fallback path
    ]
    for nb, ks, ps, bho in configs:
        out = pixel_effect_pallas(rgb, nb, ks, ps, block_ho=bho)
        out = jax.block_until_ready(out)
        ref = pixel_effect_ref(rgb, nb, ks, ps)
        np.testing.assert_allclose(np.asarray(out), np.asarray(ref),
                                   rtol=1e-4, atol=1e-4)

    print("KERNEL_OK")
</pallas_src>

<mosaic_0001>
module attributes {stable_mosaic.version = 11 : i64} {
  func.func @_pixel_effect_kernel(%arg0: i32, %arg1: memref<3x16x16xf32, #tpu.memory_space<vmem>>, %arg2: memref<16x4xf32, #tpu.memory_space<vmem>>, %arg3: memref<48x12xf32, #tpu.memory_space<vmem>>, %arg4: memref<4x128xf32, #tpu.memory_space<vmem>>, %arg5: memref<3x16x128xf32, #tpu.memory_space<vmem>>, %arg6: memref<512x4xf32, #tpu.memory_space<vmem>>) attributes {dimension_semantics = [#tpu.dimension_semantics<parallel>], iteration_bounds = array<i64: 1>, scalar_prefetch = 0 : i64, scratch_operands = 1 : i64, tpu.core_type = #tpu.core_type<tc>, window_params = [{transform_indices = @transform_0, window_bounds = array<i64: 3, 16, 16>}, {pipeline_mode = #tpu.pipeline_mode<synchronous>, transform_indices = @transform_1, window_bounds = array<i64: 16, 4>}, {pipeline_mode = #tpu.pipeline_mode<synchronous>, transform_indices = @transform_2, window_bounds = array<i64: 48, 12>}, {pipeline_mode = #tpu.pipeline_mode<synchronous>, transform_indices = @transform_3, window_bounds = array<i64: 4, 128>}, {transform_indices = @transform_4, window_bounds = array<i64: 3, 16, 128>}]} {
    %c0 = arith.constant 0 : index
    %c0_0 = arith.constant 0 : index
    %c0_1 = arith.constant 0 : index
    %0 = vector.load %arg1[%c0, %c0_0, %c0_1] : memref<3x16x16xf32, #tpu.memory_space<vmem>>, vector<3x16x16xf32>
    %cst = arith.constant dense<0.000000e+00> : vector<16x16xf32>
    %1 = vector.multi_reduction <add>, %0, %cst [0] : vector<3x16x16xf32> to vector<16x16xf32>
    %cst_2 = arith.constant 3.000000e+00 : f32
    %2 = vector.broadcast %cst_2 : f32 to vector<16x16xf32>
    %3 = arith.divf %1, %2 : vector<16x16xf32>
    %cst_3 = arith.constant 2.560000e+02 : f32
    %4 = vector.broadcast %cst_3 : f32 to vector<16x16xf32>
    %5 = arith.divf %3, %4 : vector<16x16xf32>
    %cst_4 = arith.constant 8.000000e+00 : f32
    %6 = vector.broadcast %cst_4 : f32 to vector<16x16xf32>
    %7 = arith.mulf %5, %6 : vector<16x16xf32>
    %8 = arith.fptosi %7 : vector<16x16xf32> to vector<16x16xi32>
    %9 = tpu.iota {dimensions = array<i32: 0>} : vector<8x16x16xi32>
    %10 = vector.shape_cast %8 : vector<16x16xi32> to vector<1x16x16xi32>
    %11 = vector.broadcast %10 : vector<1x16x16xi32> to vector<8x16x16xi32>
    %12 = arith.cmpi eq, %9, %11 : vector<8x16x16xi32>
    %13 = arith.extui %12 : vector<8x16x16xi1> to vector<8x16x16xi32>
    %14 = arith.sitofp %13 : vector<8x16x16xi32> to vector<8x16x16xf32>
    %15 = vector.extract_strided_slice %0 {offsets = [0, 0, 0], sizes = [1, 16, 16], strides = [1, 1, 1]} : vector<3x16x16xf32> to vector<1x16x16xf32>
    %16 = vector.shape_cast %15 : vector<1x16x16xf32> to vector<16x16xf32>
    %17 = vector.shape_cast %16 : vector<16x16xf32> to vector<1x16x16xf32>
    %18 = vector.broadcast %17 : vector<1x16x16xf32> to vector<8x16x16xf32>
    %19 = arith.mulf %18, %14 : vector<8x16x16xf32>
    %20 = vector.shape_cast %19 : vector<8x16x16xf32> to vector<128x16xf32>
    %21 = vector.extract_strided_slice %0 {offsets = [1, 0, 0], sizes = [1, 16, 16], strides = [1, 1, 1]} : vector<3x16x16xf32> to vector<1x16x16xf32>
    %22 = vector.shape_cast %21 : vector<1x16x16xf32> to vector<16x16xf32>
    %23 = vector.shape_cast %22 : vector<16x16xf32> to vector<1x16x16xf32>
    %24 = vector.broadcast %23 : vector<1x16x16xf32> to vector<8x16x16xf32>
    %25 = arith.mulf %24, %14 : vector<8x16x16xf32>
    %26 = vector.shape_cast %25 : vector<8x16x16xf32> to vector<128x16xf32>
    %27 = vector.extract_strided_slice %0 {offsets = [2, 0, 0], sizes = [1, 16, 16], strides = [1, 1, 1]} : vector<3x16x16xf32> to vector<1x16x16xf32>
    %28 = vector.shape_cast %27 : vector<1x16x16xf32> to vector<16x16xf32>
    %29 = vector.shape_cast %28 : vector<16x16xf32> to vector<1x16x16xf32>
    %30 = vector.broadcast %29 : vector<1x16x16xf32> to vector<8x16x16xf32>
    %31 = arith.mulf %30, %14 : vector<8x16x16xf32>
    %32 = vector.shape_cast %31 : vector<8x16x16xf32> to vector<128x16xf32>
    %33 = vector.shape_cast %14 : vector<8x16x16xf32> to vector<128x16xf32>
    %34 = tpu.concatenate %20, %26, %32, %33 in 0 : vector<128x16xf32>, vector<128x16xf32>, vector<128x16xf32>, vector<128x16xf32> -> vector<512x16xf32>
    %c0_5 = arith.constant 0 : index
    %c0_6 = arith.constant 0 : index
    %35 = vector.load %arg2[%c0_5, %c0_6] : memref<16x4xf32, #tpu.memory_space<vmem>>, vector<16x4xf32>
    %cst_7 = arith.constant dense<0.000000e+00> : vector<512x4xf32>
    %36 = tpu.matmul %34, %35, %cst_7 {dimension_numbers = #tpu.dot_dimension_numbers<[1], [0], [0], [1], [0, 0, 1, 1], [], []>} : vector<512x16xf32>, vector<16x4xf32>, vector<512x4xf32> -> vector<512x4xf32>
    %c0_8 = arith.constant 0 : index
    %c0_9 = arith.constant 0 : index
    %37 = vector.load %arg6[%c0_8, %c0_9] : memref<512x4xf32, #tpu.memory_space<vmem>>, vector<512x4xf32>
    tpu.vector_store %arg6[%c0_8, %c0_9], %36 {strides = array<i32>} : memref<512x4xf32, #tpu.memory_space<vmem>>, vector<512x4xf32>,
    %c0_10 = arith.constant 0 : index
    %c0_11 = arith.constant 0 : index
    %38 = tpu.strided_load %arg6[%c0_10, %c0_11] {strides = array<i32: 4, 1>} : memref<512x4xf32, #tpu.memory_space<vmem>>, vector<128x4xf32>
    %c1 = arith.constant 1 : index
    %c0_12 = arith.constant 0 : index
    %39 = tpu.strided_load %arg6[%c1, %c0_12] {strides = array<i32: 4, 1>} : memref<512x4xf32, #tpu.memory_space<vmem>>, vector<128x4xf32>
    %40 = arith.addf %38, %39 : vector<128x4xf32>
    %c2 = arith.constant 2 : index
    %c0_13 = arith.constant 0 : index
    %41 = tpu.strided_load %arg6[%c2, %c0_13] {strides = array<i32: 4, 1>} : memref<512x4xf32, #tpu.memory_space<vmem>>, vector<128x4xf32>
    %42 = arith.addf %40, %41 : vector<128x4xf32>
    %43 = vector.extract_strided_slice %42 {offsets = [96, 0], sizes = [4, 4], strides = [1, 1]} : vector<128x4xf32> to vector<4x4xf32>
    %44 = vector.extract_strided_slice %42 {offsets = [0, 0], sizes = [4, 4], strides = [1, 1]} : vector<128x4xf32> to vector<4x4xf32>
    %45 = vector.extract_strided_slice %42 {offsets = [32, 0], sizes = [4, 4], strides = [1, 1]} : vector<128x4xf32> to vector<4x4xf32>
    %46 = vector.extract_strided_slice %42 {offsets = [64, 0], sizes = [4, 4], strides = [1, 1]} : vector<128x4xf32> to vector<4x4xf32>
    %47 = vector.extract_strided_slice %42 {offsets = [100, 0], sizes = [4, 4], strides = [1, 1]} : vector<128x4xf32> to vector<4x4xf32>
    %48 = arith.cmpf ogt, %47, %43 : vector<4x4xf32>
    %49 = vector.extract_strided_slice %42 {offsets = [4, 0], sizes = [4, 4], strides = [1, 1]} : vector<128x4xf32> to vector<4x4xf32>
    %50 = arith.select %48, %49, %44 : vector<4x4xi1>, vector<4x4xf32>
    %51 = vector.extract_strided_slice %42 {offsets = [36, 0], sizes = [4, 4], strides = [1, 1]} : vector<128x4xf32> to vector<4x4xf32>
    %52 = arith.select %48, %51, %45 : vector<4x4xi1>, vector<4x4xf32>
    %53 = vector.extract_strided_slice %42 {offsets = [68, 0], sizes = [4, 4], strides = [1, 1]} : vector<128x4xf32> to vector<4x4xf32>
    %54 = arith.select %48, %53, %46 : vector<4x4xi1>, vector<4x4xf32>
    %55 = arith.select %48, %47, %43 : vector<4x4xi1>, vector<4x4xf32>
    %56 = vector.extract_strided_slice %42 {offsets = [104, 0], sizes = [4, 4], strides = [1, 1]} : vector<128x4xf32> to vector<4x4xf32>
    %57 = arith.cmpf ogt, %56, %55 : vector<4x4xf32>
    %58 = vector.extract_strided_slice %42 {offsets = [8, 0], sizes = [4, 4], strides = [1, 1]} : vector<128x4xf32> to vector<4x4xf32>
    %59 = arith.select %57, %58, %50 : vector<4x4xi1>, vector<4x4xf32>
    %60 = vector.extract_strided_slice %42 {offsets = [40, 0], sizes = [4, 4], strides = [1, 1]} : vector<128x4xf32> to vector<4x4xf32>
    %61 = arith.select %57, %60, %52 : vector<4x4xi1>, vector<4x4xf32>
    %62 = vector.extract_strided_slice %42 {offsets = [72, 0], sizes = [4, 4], strides = [1, 1]} : vector<128x4xf32> to vector<4x4xf32>
    %63 = arith.select %57, %62, %54 : vector<4x4xi1>, vector<4x4xf32>
    %64 = arith.select %57, %56, %55 : vector<4x4xi1>, vector<4x4xf32>
    %65 = vector.extract_strided_slice %42 {offsets = [108, 0], sizes = [4, 4], strides = [1, 1]} : vector<128x4xf32> to vector<4x4xf32>
    %66 = arith.cmpf ogt, %65, %64 : vector<4x4xf32>
    %67 = vector.extract_strided_slice %42 {offsets = [12, 0], sizes = [4, 4], strides = [1, 1]} : vector<128x4xf32> to vector<4x4xf32>
    %68 = arith.select %66, %67, %59 : vector<4x4xi1>, vector<4x4xf32>
    %69 = vector.extract_strided_slice %42 {offsets = [44, 0], sizes = [4, 4], strides = [1, 1]} : vector<128x4xf32> to vector<4x4xf32>
    %70 = arith.select %66, %69, %61 : vector<4x4xi1>, vector<4x4xf32>
    %71 = vector.extract_strided_slice %42 {offsets = [76, 0], sizes = [4, 4], strides = [1, 1]} : vector<128x4xf32> to vector<4x4xf32>
    %72 = arith.select %66, %71, %63 : vector<4x4xi1>, vector<4x4xf32>
    %73 = arith.select %66, %65, %64 : vector<4x4xi1>, vector<4x4xf32>
    %74 = vector.extract_strided_slice %42 {offsets = [112, 0], sizes = [4, 4], strides = [1, 1]} : vector<128x4xf32> to vector<4x4xf32>
    %75 = arith.cmpf ogt, %74, %73 : vector<4x4xf32>
    %76 = vector.extract_strided_slice %42 {offsets = [16, 0], sizes = [4, 4], strides = [1, 1]} : vector<128x4xf32> to vector<4x4xf32>
    %77 = arith.select %75, %76, %68 : vector<4x4xi1>, vector<4x4xf32>
    %78 = vector.extract_strided_slice %42 {offsets = [48, 0], sizes = [4, 4], strides = [1, 1]} : vector<128x4xf32> to vector<4x4xf32>
    %79 = arith.select %75, %78, %70 : vector<4x4xi1>, vector<4x4xf32>
    %80 = vector.extract_strided_slice %42 {offsets = [80, 0], sizes = [4, 4], strides = [1, 1]} : vector<128x4xf32> to vector<4x4xf32>
    %81 = arith.select %75, %80, %72 : vector<4x4xi1>, vector<4x4xf32>
    %82 = arith.select %75, %74, %73 : vector<4x4xi1>, vector<4x4xf32>
    %83 = vector.extract_strided_slice %42 {offsets = [116, 0], sizes = [4, 4], strides = [1, 1]} : vector<128x4xf32> to vector<4x4xf32>
    %84 = arith.cmpf ogt, %83, %82 : vector<4x4xf32>
    %85 = vector.extract_strided_slice %42 {offsets = [20, 0], sizes = [4, 4], strides = [1, 1]} : vector<128x4xf32> to vector<4x4xf32>
    %86 = arith.select %84, %85, %77 : vector<4x4xi1>, vector<4x4xf32>
    %87 = vector.extract_strided_slice %42 {offsets = [52, 0], sizes = [4, 4], strides = [1, 1]} : vector<128x4xf32> to vector<4x4xf32>
    %88 = arith.select %84, %87, %79 : vector<4x4xi1>, vector<4x4xf32>
    %89 = vector.extract_strided_slice %42 {offsets = [84, 0], sizes = [4, 4], strides = [1, 1]} : vector<128x4xf32> to vector<4x4xf32>
    %90 = arith.select %84, %89, %81 : vector<4x4xi1>, vector<4x4xf32>
    %91 = arith.select %84, %83, %82 : vector<4x4xi1>, vector<4x4xf32>
    %92 = vector.extract_strided_slice %42 {offsets = [120, 0], sizes = [4, 4], strides = [1, 1]} : vector<128x4xf32> to vector<4x4xf32>
    %93 = arith.cmpf ogt, %92, %91 : vector<4x4xf32>
    %94 = vector.extract_strided_slice %42 {offsets = [24, 0], sizes = [4, 4], strides = [1, 1]} : vector<128x4xf32> to vector<4x4xf32>
    %95 = arith.select %93, %94, %86 : vector<4x4xi1>, vector<4x4xf32>
    %96 = vector.extract_strided_slice %42 {offsets = [56, 0], sizes = [4, 4], strides = [1, 1]} : vector<128x4xf32> to vector<4x4xf32>
    %97 = arith.select %93, %96, %88 : vector<4x4xi1>, vector<4x4xf32>
    %98 = vector.extract_strided_slice %42 {offsets = [88, 0], sizes = [4, 4], strides = [1, 1]} : vector<128x4xf32> to vector<4x4xf32>
    %99 = arith.select %93, %98, %90 : vector<4x4xi1>, vector<4x4xf32>
    %100 = arith.select %93, %92, %91 : vector<4x4xi1>, vector<4x4xf32>
    %101 = vector.extract_strided_slice %42 {offsets = [124, 0], sizes = [4, 4], strides = [1, 1]} : vector<128x4xf32> to vector<4x4xf32>
    %102 = arith.cmpf ogt, %101, %100 : vector<4x4xf32>
    %103 = vector.extract_strided_slice %42 {offsets = [28, 0], sizes = [4, 4], strides = [1, 1]} : vector<128x4xf32> to vector<4x4xf32>
    %104 = arith.select %102, %103, %95 : vector<4x4xi1>, vector<4x4xf32>
    %105 = vector.extract_strided_slice %42 {offsets = [60, 0], sizes = [4, 4], strides = [1, 1]} : vector<128x4xf32> to vector<4x4xf32>
    %106 = arith.select %102, %105, %97 : vector<4x4xi1>, vector<4x4xf32>
    %107 = vector.extract_strided_slice %42 {offsets = [92, 0], sizes = [4, 4], strides = [1, 1]} : vector<128x4xf32> to vector<4x4xf32>
    %108 = arith.select %102, %107, %99 : vector<4x4xi1>, vector<4x4xf32>
    %109 = arith.select %102, %101, %100 : vector<4x4xi1>, vector<4x4xf32>
    %cst_14 = arith.constant 0.000000e+00 : f32
    %110 = vector.broadcast %cst_14 : f32 to vector<4x4xf32>
    %111 = arith.cmpf ogt, %109, %110 : vector<4x4xf32>
    %cst_15 = arith.constant 1.000000e+00 : f32
    %112 = vector.broadcast %cst_15 : f32 to vector<4x4xf32>
    %113 = arith.select %111, %109, %112 : vector<4x4xi1>, vector<4x4xf32>
    %114 = tpu.reciprocal %113 : vector<4x4xf32> -> vector<4x4xf32>
    %115 = arith.mulf %104, %114 : vector<4x4xf32>
    %116 = arith.mulf %106, %114 : vector<4x4xf32>
    %117 = arith.mulf %108, %114 : vector<4x4xf32>
    %118 = tpu.concatenate %115, %116, %117 in 0 : vector<4x4xf32>, vector<4x4xf32>, vector<4x4xf32> -> vector<12x4xf32>
    %c0_16 = arith.constant 0 : index
    %c0_17 = arith.constant 0 : index
    %119 = vector.load %arg4[%c0_16, %c0_17] : memref<4x128xf32, #tpu.memory_space<vmem>>, vector<4x128xf32>
    %cst_18 = arith.constant dense<0.000000e+00> : vector<12x128xf32>
    %120 = tpu.matmul %118, %119, %cst_18 {dimension_numbers = #tpu.dot_dimension_numbers<[1], [0], [0], [1], [0, 0, 1, 1], [], []>} : vector<12x4xf32>, vector<4x128xf32>, vector<12x128xf32> -> vector<12x128xf32>
    %c0_19 = arith.constant 0 : index
    %c0_20 = arith.constant 0 : index
    %121 = vector.load %arg3[%c0_19, %c0_20] : memref<48x12xf32, #tpu.memory_space<vmem>>, vector<48x12xf32>
    %cst_21 = arith.constant dense<0.000000e+00> : vector<48x128xf32>
    %122 = tpu.matmul %121, %120, %cst_21 {dimension_numbers = #tpu.dot_dimension_numbers<[1], [0], [0], [1], [0, 0, 1, 1], [], []>} : vector<48x12xf32>, vector<12x128xf32>, vector<48x128xf32> -> vector<48x128xf32>
    %123 = vector.shape_cast %122 : vector<48x128xf32> to vector<3x16x128xf32>
    %c0_22 = arith.constant 0 : index
    %c0_23 = arith.constant 0 : index
    %c0_24 = arith.constant 0 : index
    %124 = vector.load %arg5[%c0_22, %c0_23, %c0_24] : memref<3x16x128xf32, #tpu.memory_space<vmem>>, vector<3x16x128xf32>
    tpu.vector_store %arg5[%c0_22, %c0_23, %c0_24], %123 {strides = array<i32>} : memref<3x16x128xf32, #tpu.memory_space<vmem>>, vector<3x16x128xf32>,
    return
  }
  func.func @transform_0(%arg0: i32) -> (i32, i32, i32) {
    %c0_i32 = arith.constant 0 : i32
    %c0_i32_0 = arith.constant 0 : i32
    %c0_i32_1 = arith.constant 0 : i32
    return %c0_i32, %arg0, %c0_i32_0 : i32, i32, i32
  }
  func.func @transform_1(%arg0: i32) -> (i32, i32) {
    %c0_i32 = arith.constant 0 : i32
    %c0_i32_0 = arith.constant 0 : i32
    %c0_i32_1 = arith.constant 0 : i32
    return %c0_i32, %c0_i32_0 : i32, i32
  }
  func.func @transform_2(%arg0: i32) -> (i32, i32) {
    %c0_i32 = arith.constant 0 : i32
    %c0_i32_0 = arith.constant 0 : i32
    %c0_i32_1 = arith.constant 0 : i32
    return %c0_i32, %c0_i32_0 : i32, i32
  }
  func.func @transform_3(%arg0: i32) -> (i32, i32) {
    %c0_i32 = arith.constant 0 : i32
    %c0_i32_0 = arith.constant 0 : i32
    %c0_i32_1 = arith.constant 0 : i32
    return %c0_i32, %c0_i32_0 : i32, i32
  }
  func.func @transform_4(%arg0: i32) -> (i32, i32, i32) {
    %c0_i32 = arith.constant 0 : i32
    %c0_i32_0 = arith.constant 0 : i32
    %c0_i32_1 = arith.constant 0 : i32
    return %c0_i32, %arg0, %c0_i32_0 : i32, i32, i32
  }
}

</mosaic_0001>

<llo_original>
// kernel: tpu_custom_call.1
$region0: #{tpu_custom_call.1}
  #allocation0 [shape = 'u32[]', space=smem, size = 0x4, offset = 0x4, fixed_abs, tag = 'smem constant byte address 0x4 - core index']
  #allocation1 [shape = 'u32[144,128]{1,0:T(1,128)}', space=vmem, size = 0x12000, scoped, tag = 'internal scratch']
  #allocation2 [shape = 'f32[512,4]{1,0:T(8,128)}', space=vmem, size = 0x40000, scoped, tag = 'scratch operand']
  %s0 = inlined_call_operand.vmem [shape: f32[3,32,16], index: 0, kind: input, shape index: {}]
  %s1 = inlined_call_operand.vmem [shape: f32[16,4], index: 1, kind: input, shape index: {}]
  %s2 = inlined_call_operand.vmem [shape: f32[48,12], index: 2, kind: input, shape index: {}]
  %s3 = inlined_call_operand.vmem [shape: f32[4,128], index: 3, kind: input, shape index: {}]
  %s4 = inlined_call_operand.hbm [shape: f32[3,16,128], index: 4, kind: output, shape index: {}]
  %s5 = sld [smem:[#allocation0]]
  $region64: #{tpu_custom_call.1} parent=0
    _
  %s7 = ssub.s32 1, %s5
  %s8 = scalar_select 0, %s7, %s5
  $region1: #{tpu_custom_call.1} parent=0
    #allocation3 [shape = 'u8[24576]{0}', space=vmem, size = 0x6000, scoped, tag = 'input window, operand 0, single buffered']
    #allocation4 [shape = 'u8[24576]{0}', space=vmem, size = 0x6000, scoped, tag = 'output window, operand 0, single buffered']
    #allocation5 [shape = 's32[1]{0}', space=sflag, size = 0x4, scoped, tag = 'scoped memory for tpu_custom_call.1']
    %9 = vsyncpa [#allocation5], 0
    // Predicated region
    $region2: #{tpu_custom_call.1} parent=1 // pred_check
      _
    $region3: #{tpu_custom_call.1} parent=1 // pred_check_branch
      %11 = sbr.rel (0) target = $region5
    $region4: #{tpu_custom_call.1} parent=1 // pred_region
      // Predicated region
      $region6: #{tpu_custom_call.1} parent=4 // pred_check
        _
      $region7: #{tpu_custom_call.1} parent=4 // pred_check_branch
        %13 = sbr.rel (0) target = $region9
      $region8: #{tpu_custom_call.1} parent=4 // pred_region
        // Predicated region
        $region10: #{tpu_custom_call.1} parent=8 // pred_check
          _
        $region11: #{tpu_custom_call.1} parent=8 // pred_check_branch
          %15 = sbr.rel (0) target = $region13
        $region12: #{tpu_custom_call.1} parent=8 // pred_region
          // Predicated region
          $region25: #{tpu_custom_call.1} parent=12 // pred_check
            _
          $region26: #{tpu_custom_call.1} parent=12 // pred_check_branch
            %40 = sbr.rel (0) target = $region28
          $region27: #{tpu_custom_call.1} parent=12 // pred_region
            loop: start=0, step=1, limit=1
            $region29: #{tpu_custom_call.1} parent=27 // loop_pre_header
              _
            $region30: #{tpu_custom_call.1} parent=27 // loop_header
              %s42 = sphi 0, %s46
              %p43 = scmp.ge.s32.totalorder %s42, 1
              %s47 = sphi %s0, %s0
              %s48 = sphi [#allocation3], [#allocation3]
            $region31: #{tpu_custom_call.1} parent=27 // loop_header_branch
              %45 = sbr.rel (%p43) target = $region35
            $region32: #{tpu_custom_call.1} parent=27 // loop_body
              %v49 = vld [vmem:[%s47] sm:$0xff]
              %50 = vst [vmem:[%s48] sm:$0xff] %v49
              %v51 = vld [vmem:[%s47 + $0x8] sm:$0xff]
              %52 = vst [vmem:[%s48 + $0x8] sm:$0xff] %v51
              %v53 = vld [vmem:[%s47 + $0x20] sm:$0xff]
              %54 = vst [vmem:[%s48 + $0x10] sm:$0xff] %v53
              %v55 = vld [vmem:[%s47 + $0x28] sm:$0xff]
              %56 = vst [vmem:[%s48 + $0x18] sm:$0xff] %v55
              %v57 = vld [vmem:[%s47 + $0x40] sm:$0xff]
              %58 = vst [vmem:[%s48 + $0x20] sm:$0xff] %v57
              %v59 = vld [vmem:[%s47 + $0x48] sm:$0xff]
              %60 = vst [vmem:[%s48 + $0x28] sm:$0xff] %v59
            $region33: #{tpu_custom_call.1} parent=27 // loop_footer
              %s46 = sadd.s32 1, %s42
            $region34: #{tpu_custom_call.1} parent=27 // loop_footer_branch
              %41 = sbr.rel target = $region30
            $region35: #{tpu_custom_call.1} parent=27 // loop_exit
              _
          $region28: #{tpu_custom_call.1} parent=12 // pred_fallthru
            _
          // Predicated region
          $region36: #{tpu_custom_call.1} parent=12 // pred_check
            _
          $region37: #{tpu_custom_call.1} parent=12 // pred_check_branch
            %62 = sbr.rel target = $region39
          $region38: #{tpu_custom_call.1} parent=12 // pred_region
            _
          $region39: #{tpu_custom_call.1} parent=12 // pred_fallthru
            _
        $region13: #{tpu_custom_call.1} parent=8 // pred_fallthru
          _
        // Predicated region
        $region14: #{tpu_custom_call.1} parent=8 // pred_check
          _
        $region15: #{tpu_custom_call.1} parent=8 // pred_check_branch
          %17 = sbr.rel target = $region17
        $region16: #{tpu_custom_call.1} parent=8 // pred_region
          loop: start=0, step=1, limit=1
          $region18: #{tpu_custom_call.1} parent=16 // loop_pre_header
            _
          $region19: #{tpu_custom_call.1} parent=16 // loop_header
            %s20 = sphi 0, %s24
            %p21 = scmp.ge.s32.totalorder %s20, 1
            %s25 = sphi %s0, %s0
            %s26 = sphi [#allocation3], [#allocation3]
          $region20: #{tpu_custom_call.1} parent=16 // loop_header_branch
            %23 = sbr.rel (%p21) target = $region24
          $region21: #{tpu_custom_call.1} parent=16 // loop_body
            %v27 = vld [vmem:[%s25] sm:$0xff]
            %28 = vst [vmem:[%s26] sm:$0xff] %v27
            %v29 = vld [vmem:[%s25 + $0x8] sm:$0xff]
            %30 = vst [vmem:[%s26 + $0x8] sm:$0xff] %v29
            %v31 = vld [vmem:[%s25 + $0x20] sm:$0xff]
            %32 = vst [vmem:[%s26 + $0x10] sm:$0xff] %v31
            %v33 = vld [vmem:[%s25 + $0x28] sm:$0xff]
            %34 = vst [vmem:[%s26 + $0x18] sm:$0xff] %v33
            %v35 = vld [vmem:[%s25 + $0x40] sm:$0xff]
            %36 = vst [vmem:[%s26 + $0x20] sm:$0xff] %v35
            %v37 = vld [vmem:[%s25 + $0x48] sm:$0xff]
            %38 = vst [vmem:[%s26 + $0x28] sm:$0xff] %v37
          $region22: #{tpu_custom_call.1} parent=16 // loop_footer
            %s24 = sadd.s32 1, %s20
          $region23: #{tpu_custom_call.1} parent=16 // loop_footer_branch
            %19 = sbr.rel target = $region19
          $region24: #{tpu_custom_call.1} parent=16 // loop_exit
            _
        $region17: #{tpu_custom_call.1} parent=8 // pred_fallthru
          _
      $region9: #{tpu_custom_call.1} parent=4 // pred_fallthru
        _
      %63 = vnop
    $region5: #{tpu_custom_call.1} parent=1 // pred_fallthru
      _
    // Predicated region
    $region40: #{tpu_custom_call.1} parent=1 // pred_check
      _
    $region41: #{tpu_custom_call.1} parent=1 // pred_check_branch
      %65 = sbr.rel (0) target = $region43
    $region42: #{tpu_custom_call.1} parent=1 // pred_region
      _
    $region43: #{tpu_custom_call.1} parent=1 // pred_fallthru
      _
    // Predicated region
    $region44: #{tpu_custom_call.1} parent=1 // pred_check
      _
    $region45: #{tpu_custom_call.1} parent=1 // pred_check_branch
      %67 = sbr.rel (0) target = $region47
    $region46: #{tpu_custom_call.1} parent=1 // pred_region
      _
    $region47: #{tpu_custom_call.1} parent=1 // pred_fallthru
      _
    // Predicated region
    $region48: #{tpu_custom_call.1} parent=1 // pred_check
      _
    $region49: #{tpu_custom_call.1} parent=1 // pred_check_branch
      %69 = sbr.rel (0) target = $region51
    $region50: #{tpu_custom_call.1} parent=1 // pred_region
      _
    $region51: #{tpu_custom_call.1} parent=1 // pred_fallthru
      _
    // Predicated region
    $region52: #{tpu_custom_call.1} parent=1 // pred_check
      _
    $region53: #{tpu_custom_call.1} parent=1 // pred_check_branch
      %71 = sbr.rel (0) target = $region55
    $region54: #{tpu_custom_call.1} parent=1 // pred_region
      _
    $region55: #{tpu_custom_call.1} parent=1 // pred_fallthru
      _
    %v72 = vld [vmem:[#allocation3] sm:$0xff]
    %v73 = vld [vmem:[#allocation3 + $0x8] sm:$0xff]
    %v74 = vld [vmem:[#allocation3 + $0x10] sm:$0xff]
    %v75 = vld [vmem:[#allocation3 + $0x18] sm:$0xff]
    %v76 = vld [vmem:[#allocation3 + $0x20] sm:$0xff]
    %v77 = vld [vmem:[#allocation3 + $0x28] sm:$0xff]
    %vm78 = vcmask 130048
    %v79 = vsel %vm78, %v72, 0.0
    %v80 = vsel %vm78, %v74, 0.0
    %v81 = vadd.f32 %v79, %v80
    %v82 = vsel %vm78, %v76, 0.0
    %v83 = vadd.f32 %v81, %v82
    %v84 = vsel %vm78, %v73, 0.0
    %v85 = vsel %vm78, %v75, 0.0
    %v86 = vadd.f32 %v84, %v85
    %v87 = vsel %vm78, %v77, 0.0
    %v88 = vadd.f32 %v86, %v87
    %v89 = vrcp.pop 3.0
    %v90 = vmul.f32 %v83, %v89
    %v91 = vmul.f32 %v88, %v89
    %v92 = vrcp.pop 256.0
    %v93 = vmul.f32 %v90, %v92
    %v94 = vmul.f32 %v91, %v92
    %v95 = vmul.f32 %v93, 8.0
    %v96 = vmul.f32 %v94, 8.0
    %v97 = vcvt.f32.s32.to.zero.pseudo %v95
    %v98 = vcvt.f32.s32.to.zero.pseudo %v96
    %vm99 = vcmp.eq.s32.totalorder %v97, 0
    %vm100 = vcmp.eq.s32.totalorder %v98, 0
    %vm101 = vcmp.eq.s32.totalorder %v97, 1
    %vm102 = vcmp.eq.s32.totalorder %v98, 1
    %vm103 = vcmp.eq.s32.totalorder %v97, 2
    %vm104 = vcmp.eq.s32.totalorder %v98, 2
    %vm105 = vcmp.eq.s32.totalorder %v97, 3
    %vm106 = vcmp.eq.s32.totalorder %v98, 3
    %vm107 = vcmp.eq.s32.totalorder %v97, 4
    %vm108 = vcmp.eq.s32.totalorder %v98, 4
    %vm109 = vcmp.eq.s32.totalorder %v97, 5
    %vm110 = vcmp.eq.s32.totalorder %v98, 5
    %vm111 = vcmp.eq.s32.totalorder %v97, 6
    %vm112 = vcmp.eq.s32.totalorder %v98, 6
    %vm113 = vcmp.eq.s32.totalorder %v97, 7
    %vm114 = vcmp.eq.s32.totalorder %v98, 7
    %v115 = vsel %vm99, 1, 0
    %v116 = vsel %vm100, 1, 0
    %v117 = vsel %vm101, 1, 0
    %v118 = vsel %vm102, 1, 0
    %v119 = vsel %vm103, 1, 0
    %v120 = vsel %vm104, 1, 0
    %v121 = vsel %vm105, 1, 0
    %v122 = vsel %vm106, 1, 0
    %v123 = vsel %vm107, 1, 0
    %v124 = vsel %vm108, 1, 0
    %v125 = vsel %vm109, 1, 0
    %v126 = vsel %vm110, 1, 0
    %v127 = vsel %vm111, 1, 0
    %v128 = vsel %vm112, 1, 0
    %v129 = vsel %vm113, 1, 0
    %v130 = vsel %vm114, 1, 0
    %v131 = vcvt.s32.f32 %v115
    %v132 = vcvt.s32.f32 %v116
    %v133 = vcvt.s32.f32 %v117
    %v134 = vcvt.s32.f32 %v118
    %v135 = vcvt.s32.f32 %v119
    %v136 = vcvt.s32.f32 %v120
    %v137 = vcvt.s32.f32 %v121
    %v138 = vcvt.s32.f32 %v122
    %v139 = vcvt.s32.f32 %v123
    %v140 = vcvt.s32.f32 %v124
    %v141 = vcvt.s32.f32 %v125
    %v142 = vcvt.s32.f32 %v126
    %v143 = vcvt.s32.f32 %v127
    %v144 = vcvt.s32.f32 %v128
    %v145 = vcvt.s32.f32 %v129
    %v146 = vcvt.s32.f32 %v130
    %v147 = vmul.f32 %v72, %v131
    %v148 = vmul.f32 %v73, %v132
    %v149 = vmul.f32 %v72, %v133
    %v150 = vmul.f32 %v73, %v134
    %v151 = vmul.f32 %v72, %v135
    %v152 = vmul.f32 %v73, %v136
    %v153 = vmul.f32 %v72, %v137
    %v154 = vmul.f32 %v73, %v138
    %v155 = vmul.f32 %v72, %v139
    %v156 = vmul.f32 %v73, %v140
    %v157 = vmul.f32 %v72, %v141
    %v158 = vmul.f32 %v73, %v142
    %v159 = vmul.f32 %v72, %v143
    %v160 = vmul.f32 %v73, %v144
    %v161 = vmul.f32 %v72, %v145
    %v162 = vmul.f32 %v73, %v146
    %v163 = vmul.f32 %v74, %v131
    %v164 = vmul.f32 %v75, %v132
    %v165 = vmul.f32 %v74, %v133
    %v166 = vmul.f32 %v75, %v134
    %v167 = vmul.f32 %v74, %v135
    %v168 = vmul.f32 %v75, %v136
    %v169 = vmul.f32 %v74, %v137
    %v170 = vmul.f32 %v75, %v138
    %v171 = vmul.f32 %v74, %v139
    %v172 = vmul.f32 %v75, %v140
    %v173 = vmul.f32 %v74, %v141
    %v174 = vmul.f32 %v75, %v142
    %v175 = vmul.f32 %v74, %v143
    %v176 = vmul.f32 %v75, %v144
    %v177 = vmul.f32 %v74, %v145
    %v178 = vmul.f32 %v75, %v146
    %v179 = vmul.f32 %v76, %v131
    %v180 = vmul.f32 %v77, %v132
    %v181 = vmul.f32 %v76, %v133
    %v182 = vmul.f32 %v77, %v134
    %v183 = vmul.f32 %v76, %v135
    %v184 = vmul.f32 %v77, %v136
    %v185 = vmul.f32 %v76, %v137
    %v186 = vmul.f32 %v77, %v138
    %v187 = vmul.f32 %v76, %v139
    %v188 = vmul.f32 %v77, %v140
    %v189 = vmul.f32 %v76, %v141
    %v190 = vmul.f32 %v77, %v142
    %v191 = vmul.f32 %v76, %v143
    %v192 = vmul.f32 %v77, %v144
    %v193 = vmul.f32 %v76, %v145
    %v194 = vmul.f32 %v77, %v146
    %v195 = vld [vmem:[%s1] sm:$0xff]
    %v196 = vld [vmem:[%s1 + $0x8] sm:$0xff]
    %v198 = vsel %vm78, %v147, 0
    %v201 = vsel %vm78, %v148, 0
    %v204 = vsel %vm78, %v149, 0
    %v207 = vsel %vm78, %v150, 0
    %v210 = vsel %vm78, %v151, 0
    %v213 = vsel %vm78, %v152, 0
    %v216 = vsel %vm78, %v153, 0
    %v219 = vsel %vm78, %v154, 0
    %v222 = vsel %vm78, %v155, 0
    %v225 = vsel %vm78, %v156, 0
    %v228 = vsel %vm78, %v157, 0
    %v231 = vsel %vm78, %v158, 0
    %v234 = vsel %vm78, %v159, 0
    %v237 = vsel %vm78, %v160, 0
    %v240 = vsel %vm78, %v161, 0
    %v243 = vsel %vm78, %v162, 0
    %v246 = vsel %vm78, %v163, 0
    %v249 = vsel %vm78, %v164, 0
    %v252 = vsel %vm78, %v165, 0
    %v255 = vsel %vm78, %v166, 0
    %v258 = vsel %vm78, %v167, 0
    %v261 = vsel %vm78, %v168, 0
    %v264 = vsel %vm78, %v169, 0
    %v267 = vsel %vm78, %v170, 0
    %v270 = vsel %vm78, %v171, 0
    %v273 = vsel %vm78, %v172, 0
    %v276 = vsel %vm78, %v173, 0
    %v279 = vsel %vm78, %v174, 0
    %v282 = vsel %vm78, %v175, 0
    %v285 = vsel %vm78, %v176, 0
    %v288 = vsel %vm78, %v177, 0
    %v291 = vsel %vm78, %v178, 0
    %v294 = vsel %vm78, %v179, 0
    %v297 = vsel %vm78, %v180, 0
    %v300 = vsel %vm78, %v181, 0
    %v303 = vsel %vm78, %v182, 0
    %v306 = vsel %vm78, %v183, 0
    %v309 = vsel %vm78, %v184, 0
    %v312 = vsel %vm78, %v185, 0
    %v315 = vsel %vm78, %v186, 0
    %v318 = vsel %vm78, %v187, 0
    %v321 = vsel %vm78, %v188, 0
    %v324 = vsel %vm78, %v189, 0
    %v327 = vsel %vm78, %v190, 0
    %v330 = vsel %vm78, %v191, 0
    %v333 = vsel %vm78, %v192, 0
    %v336 = vsel %vm78, %v193, 0
    %v339 = vsel %vm78, %v194, 0
    %v342 = vsel %vm78, %v131, 0
    %v345 = vsel %vm78, %v132, 0
    %v348 = vsel %vm78, %v133, 0
    %v351 = vsel %vm78, %v134, 0
    %v354 = vsel %vm78, %v135, 0
    %v357 = vsel %vm78, %v136, 0
    %v360 = vsel %vm78, %v137, 0
    %v363 = vsel %vm78, %v138, 0
    %v366 = vsel %vm78, %v139, 0
    %v369 = vsel %vm78, %v140, 0
    %v372 = vsel %vm78, %v141, 0
    %v375 = vsel %vm78, %v142, 0
    %v378 = vsel %vm78, %v143, 0
    %v381 = vsel %vm78, %v144, 0
    %v384 = vsel %vm78, %v145, 0
    %v387 = vsel %vm78, %v146, 0
    %389 = vmatprep.subr.mxu0 0.0
    %390 = vmatpush1.msra.mxu0 %v195
    %391 = vmatprep.subr.mxu0 0.0
    %392 = vmatpush1.msra.mxu0 %v196
    %393 = vmatprep.subr.mxu0 0.0
    %394 = vmatpush1.msra.mxu0 0.0
    %395 = vmatprep.subr.mxu0 0.0
    %396 = vmatpush1.msra.mxu0 0.0
    %397 = vmatprep.subr.mxu0 0.0
    %398 = vmatpush1.msra.mxu0 0.0
    %399 = vmatprep.subr.mxu0 0.0
    %400 = vmatpush1.msra.mxu0 0.0
    %401 = vmatprep.subr.mxu0 0.0
    %402 = vmatpush1.msra.mxu0 0.0
    %403 = vmatprep.subr.mxu0 0.0
    %404 = vmatpush1.msra.mxu0 0.0
    %405 = vmatprep.subr.mxu0 0.0
    %406 = vmatpush1.msra.mxu0 0.0
    %407 = vmatprep.subr.mxu0 0.0
    %408 = vmatpush1.msra.mxu0 0.0
    %409 = vmatprep.subr.mxu0 0.0
    %410 = vmatpush1.msra.mxu0 0.0
    %411 = vmatprep.subr.mxu0 0.0
    %412 = vmatpush1.msra.mxu0 0.0
    %413 = vmatprep.subr.mxu0 0.0
    %414 = vmatpush1.msra.mxu0 0.0
    %415 = vmatprep.subr.mxu0 0.0
    %416 = vmatpush1.msra.mxu0 0.0
    %417 = vmatprep.subr.mxu0 0.0
    %418 = vmatpush1.msra.mxu0 0.0
    %419 = vmatprep.subr.mxu0 0.0
    %420 = vmatpush1.msra.mxu0 0.0
    %421 = vmatprep.subr.mxu0 0.0
    %422 = vmatpush1.msra.mxu0 0.0
    %423 = vmatprep.subr.mxu0 0.0
    %424 = vmatpush1.msra.mxu0 0.0
    %425 = vmatprep.subr.mxu0 0.0
    %426 = vmatpush1.msra.mxu0 0.0
    %427 = vmatprep.subr.mxu0 0.0
    %428 = vmatpush1.msra.mxu0 0.0
    %429 = vmatprep.subr.mxu0 0.0
    %430 = vmatpush1.msra.mxu0 0.0
    %431 = vmatprep.subr.mxu0 0.0
    %432 = vmatpush1.msra.mxu0 0.0
    %433 = vmatprep.subr.mxu0 0.0
    %434 = vmatpush1.msra.mxu0 0.0
    %435 = vmatprep.subr.mxu0 0.0
    %436 = vmatpush1.msra.mxu0 0.0
    %437 = vmatprep.subr.mxu0 0.0
    %438 = vmatpush1.msra.mxu0 0.0
    %439 = vmatprep.subr.mxu0 0.0
    %440 = vmatpush1.msra.mxu0 0.0
    %441 = vmatprep.subr.mxu0 0.0
    %442 = vmatpush1.msra.mxu0 0.0
    %443 = vmatprep.subr.mxu0 0.0
    %444 = vmatpush1.msra.mxu0 0.0
    %445 = vmatprep.subr.mxu0 0.0
    %446 = vmatpush1.msra.mxu0 0.0
    %447 = vmatprep.subr.mxu0 0.0
    %448 = vmatpush1.msra.mxu0 0.0
    %449 = vmatprep.subr.mxu0 0.0
    %450 = vmatpush1.msra.mxu0 0.0
    %451 = vmatprep.subr.mxu0 0.0
    %452 = vmatpush1.msra.mxu0 0.0
    %453 = vmatprep.mubr.f32.mxu0 0.0
    %454 = vmatmul.mubr.f32.gmra.mrb[0].mxu0 %v198
    %v455 = vpop.f32.mrb[0].mxu0
    %v456 = vadd.f32 0.0, %v455
    %v457 = vpop.f32.mrb[0].mxu0
    %458 = vmatprep.mubr.f32.mxu0 0.0
    %459 = vmatmul.mubr.f32.gmra.mrb[0].mxu0 %v201
    %v460 = vpop.f32.mrb[0].mxu0
    %v461 = vadd.f32 0.0, %v460
    %v462 = vpop.f32.mrb[0].mxu0
    %463 = vmatprep.mubr.f32.mxu0 0.0
    %464 = vmatmul.mubr.f32.gmra.mrb[0].mxu0 %v204
    %v465 = vpop.f32.mrb[0].mxu0
    %v466 = vadd.f32 0.0, %v465
    %v467 = vpop.f32.mrb[0].mxu0
    %468 = vmatprep.mubr.f32.mxu0 0.0
    %469 = vmatmul.mubr.f32.gmra.mrb[0].mxu0 %v207
    %v470 = vpop.f32.mrb[0].mxu0
    %v471 = vadd.f32 0.0, %v470
    %v472 = vpop.f32.mrb[0].mxu0
    %473 = vmatprep.mubr.f32.mxu0 0.0
    %474 = vmatmul.mubr.f32.gmra.mrb[0].mxu0 %v210
    %v475 = vpop.f32.mrb[0].mxu0
    %v476 = vadd.f32 0.0, %v475
    %v477 = vpop.f32.mrb[0].mxu0
    %478 = vmatprep.mubr.f32.mxu0 0.0
    %479 = vmatmul.mubr.f32.gmra.mrb[0].mxu0 %v213
    %v480 = vpop.f32.mrb[0].mxu0
    %v481 = vadd.f32 0.0, %v480
    %v482 = vpop.f32.mrb[0].mxu0
    %483 = vmatprep.mubr.f32.mxu0 0.0
    %484 = vmatmul.mubr.f32.gmra.mrb[0].mxu0 %v216
    %v485 = vpop.f32.mrb[0].mxu0
    %v486 = vadd.f32 0.0, %v485
    %v487 = vpop.f32.mrb[0].mxu0
    %488 = vmatprep.mubr.f32.mxu0 0.0
    %489 = vmatmul.mubr.f32.gmra.mrb[0].mxu0 %v219
    %v490 = vpop.f32.mrb[0].mxu0
    %v491 = vadd.f32 0.0, %v490
    %v492 = vpop.f32.mrb[0].mxu0
    %493 = vmatprep.mubr.f32.mxu0 0.0
    %494 = vmatmul.mubr.f32.gmra.mrb[0].mxu0 %v222
    %v495 = vpop.f32.mrb[0].mxu0
    %v496 = vadd.f32 0.0, %v495
    %v497 = vpop.f32.mrb[0].mxu0
    %498 = vmatprep.mubr.f32.mxu0 0.0
    %499 = vmatmul.mubr.f32.gmra.mrb[0].mxu0 %v225
    %v500 = vpop.f32.mrb[0].mxu0
    %v501 = vadd.f32 0.0, %v500
    %v502 = vpop.f32.mrb[0].mxu0
    %503 = vmatprep.mubr.f32.mxu0 0.0
    %504 = vmatmul.mubr.f32.gmra.mrb[0].mxu0 %v228
    %v505 = vpop.f32.mrb[0].mxu0
    %v506 = vadd.f32 0.0, %v505
    %v507 = vpop.f32.mrb[0].mxu0
    %508 = vmatprep.mubr.f32.mxu0 0.0
    %509 = vmatmul.mubr.f32.gmra.mrb[0].mxu0 %v231
    %v510 = vpop.f32.mrb[0].mxu0
    %v511 = vadd.f32 0.0, %v510
    %v512 = vpop.f32.mrb[0].mxu0
    %513 = vmatprep.mubr.f32.mxu0 0.0
    %514 = vmatmul.mubr.f32.gmra.mrb[0].mxu0 %v234
    %v515 = vpop.f32.mrb[0].mxu0
    %v516 = vadd.f32 0.0, %v515
    %v517 = vpop.f32.mrb[0].mxu0
    %518 = vmatprep.mubr.f32.mxu0 0.0
    %519 = vmatmul.mubr.f32.gmra.mrb[0].mxu0 %v237
    %v520 = vpop.f32.mrb[0].mxu0
    %v521 = vadd.f32 0.0, %v520
    %v522 = vpop.f32.mrb[0].mxu0
    %523 = vmatprep.mubr.f32.mxu0 0.0
    %524 = vmatmul.mubr.f32.gmra.mrb[0].mxu0 %v240
    %v525 = vpop.f32.mrb[0].mxu0
    %v526 = vadd.f32 0.0, %v525
    %v527 = vpop.f32.mrb[0].mxu0
    %528 = vmatprep.mubr.f32.mxu0 0.0
    %529 = vmatmul.mubr.f32.gmra.mrb[0].mxu0 %v243
    %v530 = vpop.f32.mrb[0].mxu0
    %v531 = vadd.f32 0.0, %v530
    %v532 = vpop.f32.mrb[0].mxu0
    %533 = vmatprep.mubr.f32.mxu0 0.0
    %534 = vmatmul.mubr.f32.gmra.mrb[0].mxu0 %v246
    %v535 = vpop.f32.mrb[0].mxu0
    %v536 = vadd.f32 0.0, %v535
    %v537 = vpop.f32.mrb[0].mxu0
    %538 = vmatprep.mubr.f32.mxu0 0.0
    %539 = vmatmul.mubr.f32.gmra.mrb[0].mxu0 %v249
    %v540 = vpop.f32.mrb[0].mxu0
    %v541 = vadd.f32 0.0, %v540
    %v542 = vpop.f32.mrb[0].mxu0
    %543 = vmatprep.mubr.f32.mxu0 0.0
    %544 = vmatmul.mubr.f32.gmra.mrb[0].mxu0 %v252
    %v545 = vpop.f32.mrb[0].mxu0
    %v546 = vadd.f32 0.0, %v545
    %v547 = vpop.f32.mrb[0].mxu0
    %548 = vmatprep.mubr.f32.mxu0 0.0
    %549 = vmatmul.mubr.f32.gmra.mrb[0].mxu0 %v255
    %v550 = vpop.f32.mrb[0].mxu0
    %v551 = vadd.f32 0.0, %v550
    %v552 = vpop.f32.mrb[0].mxu0
    %553 = vmatprep.mubr.f32.mxu0 0.0
    %554 = vmatmul.mubr.f32.gmra.mrb[0].mxu0 %v258
    %v555 = vpop.f32.mrb[0].mxu0
    %v556 = vadd.f32 0.0, %v555
    %v557 = vpop.f32.mrb[0].mxu0
    %558 = vmatprep.mubr.f32.mxu0 0.0
    %559 = vmatmul.mubr.f32.gmra.mrb[0].mxu0 %v261
    %v560 = vpop.f32.mrb[0].mxu0
    %v561 = vadd.f32 0.0, %v560
    %v562 = vpop.f32.mrb[0].mxu0
    %563 = vmatprep.mubr.f32.mxu0 0.0
    %564 = vmatmul.mubr.f32.gmra.mrb[0].mxu0 %v264
    %v565 = vpop.f32.mrb[0].mxu0
    %v566 = vadd.f32 0.0, %v565
    %v567 = vpop.f32.mrb[0].mxu0
    %568 = vmatprep.mubr.f32.mxu0 0.0
    %569 = vmatmul.mubr.f32.gmra.mrb[0].mxu0 %v267
    %v570 = vpop.f32.mrb[0].mxu0
    %v571 = vadd.f32 0.0, %v570
    %v572 = vpop.f32.mrb[0].mxu0
    %573 = vmatprep.mubr.f32.mxu0 0.0
    %574 = vmatmul.mubr.f32.gmra.mrb[0].mxu0 %v270
    %v575 = vpop.f32.mrb[0].mxu0
    %v576 = vadd.f32 0.0, %v575
    %v577 = vpop.f32.mrb[0].mxu0
    %578 = vmatprep.mubr.f32.mxu0 0.0
    %579 = vmatmul.mubr.f32.gmra.mrb[0].mxu0 %v273
    %v580 = vpop.f32.mrb[0].mxu0
    %v581 = vadd.f32 0.0, %v580
    %v582 = vpop.f32.mrb[0].mxu0
    %583 = vmatprep.mubr.f32.mxu0 0.0
    %584 = vmatmul.mubr.f32.gmra.mrb[0].mxu0 %v276
    %v585 = vpop.f32.mrb[0].mxu0
    %v586 = vadd.f32 0.0, %v585
    %v587 = vpop.f32.mrb[0].mxu0
    %588 = vmatprep.mubr.f32.mxu0 0.0
    %589 = vmatmul.mubr.f32.gmra.mrb[0].mxu0 %v279
    %v590 = vpop.f32.mrb[0].mxu0
    %v591 = vadd.f32 0.0, %v590
    %v592 = vpop.f32.mrb[0].mxu0
    %593 = vmatprep.mubr.f32.mxu0 0.0
    %594 = vmatmul.mubr.f32.gmra.mrb[0].mxu0 %v282
    %v595 = vpop.f32.mrb[0].mxu0
    %v596 = vadd.f32 0.0, %v595
    %v597 = vpop.f32.mrb[0].mxu0
    %598 = vmatprep.mubr.f32.mxu0 0.0
    %599 = vmatmul.mubr.f32.gmra.mrb[0].mxu0 %v285
    %v600 = vpop.f32.mrb[0].mxu0
    %v601 = vadd.f32 0.0, %v600
    %v602 = vpop.f32.mrb[0].mxu0
    %603 = vmatprep.mubr.f32.mxu0 0.0
    %604 = vmatmul.mubr.f32.gmra.mrb[0].mxu0 %v288
    %v605 = vpop.f32.mrb[0].mxu0
    %v606 = vadd.f32 0.0, %v605
    %v607 = vpop.f32.mrb[0].mxu0
    %608 = vmatprep.mubr.f32.mxu0 0.0
    %609 = vmatmul.mubr.f32.gmra.mrb[0].mxu0 %v291
    %v610 = vpop.f32.mrb[0].mxu0
    %v611 = vadd.f32 0.0, %v610
    %v612 = vpop.f32.mrb[0].mxu0
    %613 = vmatprep.mubr.f32.mxu0 0.0
    %614 = vmatmul.mubr.f32.gmra.mrb[0].mxu0 %v294
    %v615 = vpop.f32.mrb[0].mxu0
    %v616 = vadd.f32 0.0, %v615
    %v617 = vpop.f32.mrb[0].mxu0
    %618 = vmatprep.mubr.f32.mxu0 0.0
    %619 = vmatmul.mubr.f32.gmra.mrb[0].mxu0 %v297
    %v620 = vpop.f32.mrb[0].mxu0
    %v621 = vadd.f32 0.0, %v620
    %v622 = vpop.f32.mrb[0].mxu0
    %623 = vmatprep.mubr.f32.mxu0 0.0
    %624 = vmatmul.mubr.f32.gmra.mrb[0].mxu0 %v300
    %v625 = vpop.f32.mrb[0].mxu0
    %v626 = vadd.f32 0.0, %v625
    %v627 = vpop.f32.mrb[0].mxu0
    %628 = vmatprep.mubr.f32.mxu0 0.0
    %629 = vmatmul.mubr.f32.gmra.mrb[0].mxu0 %v303
    %v630 = vpop.f32.mrb[0].mxu0
    %v631 = vadd.f32 0.0, %v630
    %v632 = vpop.f32.mrb[0].mxu0
    %633 = vmatprep.mubr.f32.mxu0 0.0
    %634 = vmatmul.mubr.f32.gmra.mrb[0].mxu0 %v306
    %v635 = vpop.f32.mrb[0].mxu0
    %v636 = vadd.f32 0.0, %v635
    %v637 = vpop.f32.mrb[0].mxu0
    %638 = vmatprep.mubr.f32.mxu0 0.0
    %639 = vmatmul.mubr.f32.gmra.mrb[0].mxu0 %v309
    %v640 = vpop.f32.mrb[0].mxu0
    %v641 = vadd.f32 0.0, %v640
    %v642 = vpop.f32.mrb[0].mxu0
    %643 = vmatprep.mubr.f32.mxu0 0.0
    %644 = vmatmul.mubr.f32.gmra.mrb[0].mxu0 %v312
    %v645 = vpop.f32.mrb[0].mxu0
    %v646 = vadd.f32 0.0, %v645
    %v647 = vpop.f32.mrb[0].mxu0
    %648 = vmatprep.mubr.f32.mxu0 0.0
    %649 = vmatmul.mubr.f32.gmra.mrb[0].mxu0 %v315
    %v650 = vpop.f32.mrb[0].mxu0
    %v651 = vadd.f32 0.0, %v650
    %v652 = vpop.f32.mrb[0].mxu0
    %653 = vmatprep.mubr.f32.mxu0 0.0
    %654 = vmatmul.mubr.f32.gmra.mrb[0].mxu0 %v318
    %v655 = vpop.f32.mrb[0].mxu0
    %v656 = vadd.f32 0.0, %v655
    %v657 = vpop.f32.mrb[0].mxu0
    %658 = vmatprep.mubr.f32.mxu0 0.0
    %659 = vmatmul.mubr.f32.gmra.mrb[0].mxu0 %v321
    %v660 = vpop.f32.mrb[0].mxu0
    %v661 = vadd.f32 0.0, %v660
    %v662 = vpop.f32.mrb[0].mxu0
    %663 = vmatprep.mubr.f32.mxu0 0.0
    %664 = vmatmul.mubr.f32.gmra.mrb[0].mxu0 %v324
    %v665 = vpop.f32.mrb[0].mxu0
    %v666 = vadd.f32 0.0, %v665
    %v667 = vpop.f32.mrb[0].mxu0
    %668 = vmatprep.mubr.f32.mxu0 0.0
    %669 = vmatmul.mubr.f32.gmra.mrb[0].mxu0 %v327
    %v670 = vpop.f32.mrb[0].mxu0
    %v671 = vadd.f32 0.0, %v670
    %v672 = vpop.f32.mrb[0].mxu0
    %673 = vmatprep.mubr.f32.mxu0 0.0
    %674 = vmatmul.mubr.f32.gmra.mrb[0].mxu0 %v330
    %v675 = vpop.f32.mrb[0].mxu0
    %v676 = vadd.f32 0.0, %v675
    %v677 = vpop.f32.mrb[0].mxu0
    %678 = vmatprep.mubr.f32.mxu0 0.0
    %679 = vmatmul.mubr.f32.gmra.mrb[0].mxu0 %v333
    %v680 = vpop.f32.mrb[0].mxu0
    %v681 = vadd.f32 0.0, %v680
    %v682 = vpop.f32.mrb[0].mxu0
    %683 = vmatprep.mubr.f32.mxu0 0.0
    %684 = vmatmul.mubr.f32.gmra.mrb[0].mxu0 %v336
    %v685 = vpop.f32.mrb[0].mxu0
    %v686 = vadd.f32 0.0, %v685
    %v687 = vpop.f32.mrb[0].mxu0
    %688 = vmatprep.mubr.f32.mxu0 0.0
    %689 = vmatmul.mubr.f32.gmra.mrb[0].mxu0 %v339
    %v690 = vpop.f32.mrb[0].mxu0
    %v691 = vadd.f32 0.0, %v690
    %v692 = vpop.f32.mrb[0].mxu0
    %693 = vmatprep.mubr.f32.mxu0 0.0
    %694 = vmatmul.mubr.f32.gmra.mrb[0].mxu0 %v342
    %v695 = vpop.f32.mrb[0].mxu0
    %v696 = vadd.f32 0.0, %v695
    %v697 = vpop.f32.mrb[0].mxu0
    %698 = vmatprep.mubr.f32.mxu0 0.0
    %699 = vmatmul.mubr.f32.gmra.mrb[0].mxu0 %v345
    %v700 = vpop.f32.mrb[0].mxu0
    %v701 = vadd.f32 0.0, %v700
    %v702 = vpop.f32.mrb[0].mxu0
    %703 = vmatprep.mubr.f32.mxu0 0.0
    %704 = vmatmul.mubr.f32.gmra.mrb[0].mxu0 %v348
    %v705 = vpop.f32.mrb[0].mxu0
    %v706 = vadd.f32 0.0, %v705
    %v707 = vpop.f32.mrb[0].mxu0
    %708 = vmatprep.mubr.f32.mxu0 0.0
    %709 = vmatmul.mubr.f32.gmra.mrb[0].mxu0 %v351
    %v710 = vpop.f32.mrb[0].mxu0
    %v711 = vadd.f32 0.0, %v710
    %v712 = vpop.f32.mrb[0].mxu0
    %713 = vmatprep.mubr.f32.mxu0 0.0
    %714 = vmatmul.mubr.f32.gmra.mrb[0].mxu0 %v354
    %v715 = vpop.f32.mrb[0].mxu0
    %v716 = vadd.f32 0.0, %v715
    %v717 = vpop.f32.mrb[0].mxu0
    %718 = vmatprep.mubr.f32.mxu0 0.0
    %719 = vmatmul.mubr.f32.gmra.mrb[0].mxu0 %v357
    %v720 = vpop.f32.mrb[0].mxu0
    %v721 = vadd.f32 0.0, %v720
    %v722 = vpop.f32.mrb[0].mxu0
    %723 = vmatprep.mubr.f32.mxu0 0.0
    %724 = vmatmul.mubr.f32.gmra.mrb[0].mxu0 %v360
    %v725 = vpop.f32.mrb[0].mxu0
    %v726 = vadd.f32 0.0, %v725
    %v727 = vpop.f32.mrb[0].mxu0
    %728 = vmatprep.mubr.f32.mxu0 0.0
    %729 = vmatmul.mubr.f32.gmra.mrb[0].mxu0 %v363
    %v730 = vpop.f32.mrb[0].mxu0
    %v731 = vadd.f32 0.0, %v730
    %v732 = vpop.f32.mrb[0].mxu0
    %733 = vmatprep.mubr.f32.mxu0 0.0
    %734 = vmatmul.mubr.f32.gmra.mrb[0].mxu0 %v366
    %v735 = vpop.f32.mrb[0].mxu0
    %v736 = vadd.f32 0.0, %v735
    %v737 = vpop.f32.mrb[0].mxu0
    %738 = vmatprep.mubr.f32.mxu0 0.0
    %739 = vmatmul.mubr.f32.gmra.mrb[0].mxu0 %v369
    %v740 = vpop.f32.mrb[0].mxu0
    %v741 = vadd.f32 0.0, %v740
    %v742 = vpop.f32.mrb[0].mxu0
    %743 = vmatprep.mubr.f32.mxu0 0.0
    %744 = vmatmul.mubr.f32.gmra.mrb[0].mxu0 %v372
    %v745 = vpop.f32.mrb[0].mxu0
    %v746 = vadd.f32 0.0, %v745
    %v747 = vpop.f32.mrb[0].mxu0
    %748 = vmatprep.mubr.f32.mxu0 0.0
    %749 = vmatmul.mubr.f32.gmra.mrb[0].mxu0 %v375
    %v750 = vpop.f32.mrb[0].mxu0
    %v751 = vadd.f32 0.0, %v750
    %v752 = vpop.f32.mrb[0].mxu0
    %753 = vmatprep.mubr.f32.mxu0 0.0
    %754 = vmatmul.mubr.f32.gmra.mrb[0].mxu0 %v378
    %v755 = vpop.f32.mrb[0].mxu0
    %v756 = vadd.f32 0.0, %v755
    %v757 = vpop.f32.mrb[0].mxu0
    %758 = vmatprep.mubr.f32.mxu0 0.0
    %759 = vmatmul.mubr.f32.gmra.mrb[0].mxu0 %v381
    %v760 = vpop.f32.mrb[0].mxu0
    %v761 = vadd.f32 0.0, %v760
    %v762 = vpop.f32.mrb[0].mxu0
    %763 = vmatprep.mubr.f32.mxu0 0.0
    %764 = vmatmul.mubr.f32.gmra.mrb[0].mxu0 %v384
    %v765 = vpop.f32.mrb[0].mxu0
    %v766 = vadd.f32 0.0, %v765
    %v767 = vpop.f32.mrb[0].mxu0
    %768 = vmatprep.mubr.f32.mxu0 0.0
    %769 = vmatmul.mubr.f32.gmra.mrb[0].mxu0 %v387
    %v770 = vpop.f32.mrb[0].mxu0
    %v771 = vadd.f32 0.0, %v770
    %v772 = vpop.f32.mrb[0].mxu0
    %773 = vdwg.mxu0
    %vm774 = vcmask 31744
    %775 = vst.msk [vmem:[#allocation2] sm:$0xff] %vm774, %v456
    %776 = vst.msk [vmem:[#allocation2 + $0x8] sm:$0xff] %vm774, %v461
    %777 = vst.msk [vmem:[#allocation2 + $0x10] sm:$0xff] %vm774, %v466
    %778 = vst.msk [vmem:[#allocation2 + $0x18] sm:$0xff] %vm774, %v471
    %779 = vst.msk [vmem:[#allocation2 + $0x20] sm:$0xff] %vm774, %v476
    %780 = vst.msk [vmem:[#allocation2 + $0x28] sm:$0xff] %vm774, %v481
    %781 = vst.msk [vmem:[#allocation2 + $0x30] sm:$0xff] %vm774, %v486
    %782 = vst.msk [vmem:[#allocation2 + $0x38] sm:$0xff] %vm774, %v491
    %783 = vst.msk [vmem:[#allocation2 + $0x40] sm:$0xff] %vm774, %v496
    %784 = vst.msk [vmem:[#allocation2 + $0x48] sm:$0xff] %vm774, %v501
    %785 = vst.msk [vmem:[#allocation2 + $0x50] sm:$0xff] %vm774, %v506
    %786 = vst.msk [vmem:[#allocation2 + $0x58] sm:$0xff] %vm774, %v511
    %787 = vst.msk [vmem:[#allocation2 + $0x60] sm:$0xff] %vm774, %v516
    %788 = vst.msk [vmem:[#allocation2 + $0x68] sm:$0xff] %vm774, %v521
    %789 = vst.msk [vmem:[#allocation2 + $0x70] sm:$0xff] %vm774, %v526
    %790 = vst.msk [vmem:[#allocation2 + $0x78] sm:$0xff] %vm774, %v531
    %791 = vst.msk [vmem:[#allocation2 + $0x80] sm:$0xff] %vm774, %v536
    %792 = vst.msk [vmem:[#allocation2 + $0x88] sm:$0xff] %vm774, %v541
    %793 = vst.msk [vmem:[#allocation2 + $0x90] sm:$0xff] %vm774, %v546
    %794 = vst.msk [vmem:[#allocation2 + $0x98] sm:$0xff] %vm774, %v551
    %795 = vst.msk [vmem:[#allocation2 + $0xa0] sm:$0xff] %vm774, %v556
    %796 = vst.msk [vmem:[#allocation2 + $0xa8] sm:$0xff] %vm774, %v561
    %797 = vst.msk [vmem:[#allocation2 + $0xb0] sm:$0xff] %vm774, %v566
    %798 = vst.msk [vmem:[#allocation2 + $0xb8] sm:$0xff] %vm774, %v571
    %799 = vst.msk [vmem:[#allocation2 + $0xc0] sm:$0xff] %vm774, %v576
    %800 = vst.msk [vmem:[#allocation2 + $0xc8] sm:$0xff] %vm774, %v581
    %801 = vst.msk [vmem:[#allocation2 + $0xd0] sm:$0xff] %vm774, %v586
    %802 = vst.msk [vmem:[#allocation2 + $0xd8] sm:$0xff] %vm774, %v591
    %803 = vst.msk [vmem:[#allocation2 + $0xe0] sm:$0xff] %vm774, %v596
    %804 = vst.msk [vmem:[#allocation2 + $0xe8] sm:$0xff] %vm774, %v601
    %805 = vst.msk [vmem:[#allocation2 + $0xf0] sm:$0xff] %vm774, %v606
    %806 = vst.msk [vmem:[#allocation2 + $0xf8] sm:$0xff] %vm774, %v611
    %807 = vst.msk [vmem:[#allocation2 + $0x100] sm:$0xff] %vm774, %v616
    %808 = vst.msk [vmem:[#allocation2 + $0x108] sm:$0xff] %vm774, %v621
    %809 = vst.msk [vmem:[#allocation2 + $0x110] sm:$0xff] %vm774, %v626
    %810 = vst.msk [vmem:[#allocation2 + $0x118] sm:$0xff] %vm774, %v631
    %811 = vst.msk [vmem:[#allocation2 + $0x120] sm:$0xff] %vm774, %v636
    %812 = vst.msk [vmem:[#allocation2 + $0x128] sm:$0xff] %vm774, %v641
    %813 = vst.msk [vmem:[#allocation2 + $0x130] sm:$0xff] %vm774, %v646
    %814 = vst.msk [vmem:[#allocation2 + $0x138] sm:$0xff] %vm774, %v651
    %815 = vst.msk [vmem:[#allocation2 + $0x140] sm:$0xff] %vm774, %v656
    %816 = vst.msk [vmem:[#allocation2 + $0x148] sm:$0xff] %vm774, %v661
    %817 = vst.msk [vmem:[#allocation2 + $0x150] sm:$0xff] %vm774, %v666
    %818 = vst.msk [vmem:[#allocation2 + $0x158] sm:$0xff] %vm774, %v671
    %819 = vst.msk [vmem:[#allocation2 + $0x160] sm:$0xff] %vm774, %v676
    %820 = vst.msk [vmem:[#allocation2 + $0x168] sm:$0xff] %vm774, %v681
    %821 = vst.msk [vmem:[#allocation2 + $0x170] sm:$0xff] %vm774, %v686
    %822 = vst.msk [vmem:[#allocation2 + $0x178] sm:$0xff] %vm774, %v691
    %823 = vst.msk [vmem:[#allocation2 + $0x180] sm:$0xff] %vm774, %v696
    %824 = vst.msk [vmem:[#allocation2 + $0x188] sm:$0xff] %vm774, %v701
    %825 = vst.msk [vmem:[#allocation2 + $0x190] sm:$0xff] %vm774, %v706
    %826 = vst.msk [vmem:[#allocation2 + $0x198] sm:$0xff] %vm774, %v711
    %827 = vst.msk [vmem:[#allocation2 + $0x1a0] sm:$0xff] %vm774, %v716
    %828 = vst.msk [vmem:[#allocation2 + $0x1a8] sm:$0xff] %vm774, %v721
    %829 = vst.msk [vmem:[#allocation2 + $0x1b0] sm:$0xff] %vm774, %v726
    %830 = vst.msk [vmem:[#allocation2 + $0x1b8] sm:$0xff] %vm774, %v731
    %831 = vst.msk [vmem:[#allocation2 + $0x1c0] sm:$0xff] %vm774, %v736
    %832 = vst.msk [vmem:[#allocation2 + $0x1c8] sm:$0xff] %vm774, %v741
    %833 = vst.msk [vmem:[#allocation2 + $0x1d0] sm:$0xff] %vm774, %v746
    %834 = vst.msk [vmem:[#allocation2 + $0x1d8] sm:$0xff] %vm774, %v751
    %835 = vst.msk [vmem:[#allocation2 + $0x1e0] sm:$0xff] %vm774, %v756
    %836 = vst.msk [vmem:[#allocation2 + $0x1e8] sm:$0xff] %vm774, %v761
    %837 = vst.msk [vmem:[#allocation2 + $0x1f0] sm:$0xff] %vm774, %v766
    %838 = vst.msk [vmem:[#allocation2 + $0x1f8] sm:$0xff] %vm774, %v771
    %v839 = vld [vmem:[#allocation2] ss:$4 sm:$0xff]
    %s840 = scalar_lea.vmem [#allocation2], 32
    %v841 = vld [vmem:[%s840] ss:$4 sm:$0xff]
    %s842 = scalar_lea.vmem [#allocation2], 64
    %v843 = vld [vmem:[%s842] ss:$4 sm:$0xff]
    %s844 = scalar_lea.vmem [#allocation2], 96
    %v845 = vld [vmem:[%s844] ss:$4 sm:$0xff]
    %s846 = scalar_lea.vmem [#allocation2], 128
    %v847 = vld [vmem:[%s846] ss:$4 sm:$0xff]
    %s848 = scalar_lea.vmem [#allocation2], 160
    %v849 = vld [vmem:[%s848] ss:$4 sm:$0xff]
    %s850 = scalar_lea.vmem [#allocation2], 192
    %v851 = vld [vmem:[%s850] ss:$4 sm:$0xff]
    %s852 = scalar_lea.vmem [#allocation2], 224
    %v853 = vld [vmem:[%s852] ss:$4 sm:$0xff]
    %s854 = scalar_lea.vmem [#allocation2], 256
    %v855 = vld [vmem:[%s854] ss:$4 sm:$0xff]
    %s856 = scalar_lea.vmem [#allocation2], 288
    %v857 = vld [vmem:[%s856] ss:$4 sm:$0xff]
    %s858 = scalar_lea.vmem [#allocation2], 320
    %v859 = vld [vmem:[%s858] ss:$4 sm:$0xff]
    %s860 = scalar_lea.vmem [#allocation2], 352
    %v861 = vld [vmem:[%s860] ss:$4 sm:$0xff]
    %s862 = scalar_lea.vmem [#allocation2], 384
    %v863 = vld [vmem:[%s862] ss:$4 sm:$0xff]
    %s864 = scalar_lea.vmem [#allocation2], 416
    %v865 = vld [vmem:[%s864] ss:$4 sm:$0xff]
    %s866 = scalar_lea.vmem [#allocation2], 448
    %v867 = vld [vmem:[%s866] ss:$4 sm:$0xff]
    %s868 = scalar_lea.vmem [#allocation2], 480
    %v869 = vld [vmem:[%s868] ss:$4 sm:$0xff]
    %s870 = scalar_lea.vmem [#allocation2], 1
    %v871 = vld [vmem:[%s870] ss:$4 sm:$0xff]
    %s872 = scalar_lea.vmem [#allocation2], 33
    %v873 = vld [vmem:[%s872] ss:$4 sm:$0xff]
    %s874 = scalar_lea.vmem [#allocation2], 65
    %v875 = vld [vmem:[%s874] ss:$4 sm:$0xff]
    %s876 = scalar_lea.vmem [#allocation2], 97
    %v877 = vld [vmem:[%s876] ss:$4 sm:$0xff]
    %s878 = scalar_lea.vmem [#allocation2], 129
    %v879 = vld [vmem:[%s878] ss:$4 sm:$0xff]
    %s880 = scalar_lea.vmem [#allocation2], 161
    %v881 = vld [vmem:[%s880] ss:$4 sm:$0xff]
    %s882 = scalar_lea.vmem [#allocation2], 193
    %v883 = vld [vmem:[%s882] ss:$4 sm:$0xff]
    %s884 = scalar_lea.vmem [#allocation2], 225
    %v885 = vld [vmem:[%s884] ss:$4 sm:$0xff]
    %s886 = scalar_lea.vmem [#allocation2], 257
    %v887 = vld [vmem:[%s886] ss:$4 sm:$0xff]
    %s888 = scalar_lea.vmem [#allocation2], 289
    %v889 = vld [vmem:[%s888] ss:$4 sm:$0xff]
    %s890 = scalar_lea.vmem [#allocation2], 321
    %v891 = vld [vmem:[%s890] ss:$4 sm:$0xff]
    %s892 = scalar_lea.vmem [#allocation2], 353
    %v893 = vld [vmem:[%s892] ss:$4 sm:$0xff]
    %s894 = scalar_lea.vmem [#allocation2], 385
    %v895 = vld [vmem:[%s894] ss:$4 sm:$0xff]
    %s896 = scalar_lea.vmem [#allocation2], 417
    %v897 = vld [vmem:[%s896] ss:$4 sm:$0xff]
    %s898 = scalar_lea.vmem [#allocation2], 449
    %v899 = vld [vmem:[%s898] ss:$4 sm:$0xff]
    %s900 = scalar_lea.vmem [#allocation2], 481
    %v901 = vld [vmem:[%s900] ss:$4 sm:$0xff]
    %v902 = vadd.f32 %v839, %v871
    %v903 = vadd.f32 %v841, %v873
    %v904 = vadd.f32 %v843, %v875
    %v905 = vadd.f32 %v845, %v877
    %v906 = vadd.f32 %v847, %v879
    %v907 = vadd.f32 %v849, %v881
    %v908 = vadd.f32 %v851, %v883
    %v909 = vadd.f32 %v853, %v885
    %v910 = vadd.f32 %v855, %v887
    %v911 = vadd.f32 %v857, %v889
    %v912 = vadd.f32 %v859, %v891
    %v913 = vadd.f32 %v861, %v893
    %v914 = vadd.f32 %v863, %v895
    %v915 = vadd.f32 %v865, %v897
    %v916 = vadd.f32 %v867, %v899
    %v917 = vadd.f32 %v869, %v901
    %s918 = scalar_lea.vmem [#allocation2], 2
    %v919 = vld [vmem:[%s918] ss:$4 sm:$0xff]
    %s920 = scalar_lea.vmem [#allocation2], 34
    %v921 = vld [vmem:[%s920] ss:$4 sm:$0xff]
    %s922 = scalar_lea.vmem [#allocation2], 66
    %v923 = vld [vmem:[%s922] ss:$4 sm:$0xff]
    %s924 = scalar_lea.vmem [#allocation2], 98
    %v925 = vld [vmem:[%s924] ss:$4 sm:$0xff]
    %s926 = scalar_lea.vmem [#allocation2], 130
    %v927 = vld [vmem:[%s926] ss:$4 sm:$0xff]
    %s928 = scalar_lea.vmem [#allocation2], 162
    %v929 = vld [vmem:[%s928] ss:$4 sm:$0xff]
    %s930 = scalar_lea.vmem [#allocation2], 194
    %v931 = vld [vmem:[%s930] ss:$4 sm:$0xff]
    %s932 = scalar_lea.vmem [#allocation2], 226
    %v933 = vld [vmem:[%s932] ss:$4 sm:$0xff]
    %s934 = scalar_lea.vmem [#allocation2], 258
    %v935 = vld [vmem:[%s934] ss:$4 sm:$0xff]
    %s936 = scalar_lea.vmem [#allocation2], 290
    %v937 = vld [vmem:[%s936] ss:$4 sm:$0xff]
    %s938 = scalar_lea.vmem [#allocation2], 322
    %v939 = vld [vmem:[%s938] ss:$4 sm:$0xff]
    %s940 = scalar_lea.vmem [#allocation2], 354
    %v941 = vld [vmem:[%s940] ss:$4 sm:$0xff]
    %s942 = scalar_lea.vmem [#allocation2], 386
    %v943 = vld [vmem:[%s942] ss:$4 sm:$0xff]
    %s944 = scalar_lea.vmem [#allocation2], 418
    %v945 = vld [vmem:[%s944] ss:$4 sm:$0xff]
    %s946 = scalar_lea.vmem [#allocation2], 450
    %v947 = vld [vmem:[%s946] ss:$4 sm:$0xff]
    %s948 = scalar_lea.vmem [#allocation2], 482
    %v949 = vld [vmem:[%s948] ss:$4 sm:$0xff]
    %v950 = vadd.f32 %v902, %v919
    %v951 = vadd.f32 %v903, %v921
    %v952 = vadd.f32 %v904, %v923
    %v953 = vadd.f32 %v905, %v925
    %v954 = vadd.f32 %v906, %v927
    %v955 = vadd.f32 %v907, %v929
    %v956 = vadd.f32 %v908, %v931
    %v957 = vadd.f32 %v909, %v933
    %v958 = vadd.f32 %v910, %v935
    %v959 = vadd.f32 %v911, %v937
    %v960 = vadd.f32 %v912, %v939
    %v961 = vadd.f32 %v913, %v941
    %v962 = vadd.f32 %v914, %v943
    %v963 = vadd.f32 %v915, %v945
    %v964 = vadd.f32 %v916, %v947
    %v965 = vadd.f32 %v917, %v949
    %v967 = vrot.slane %v962, 4
    %vm969 = vcmp.gt.f32.partialorder %v962, %v967
    %v971 = vrot.slane %v950, 4
    %v973 = vsel %vm969, %v950, %v971
    %v975 = vrot.slane %v954, 4
    %v977 = vsel %vm969, %v954, %v975
    %v979 = vrot.slane %v958, 4
    %v981 = vsel %vm969, %v958, %v979
    %v982 = vsel %vm969, %v962, %v967
    %v984 = vrot.slane %v982, 4
    %vm986 = vcmp.gt.f32.partialorder %v963, %v984
    %v988 = vrot.slane %v973, 4
    %v990 = vsel %vm986, %v951, %v988
    %v992 = vrot.slane %v977, 4
    %v994 = vsel %vm986, %v955, %v992
    %v996 = vrot.slane %v981, 4
    %v998 = vsel %vm986, %v959, %v996
    %v999 = vsel %vm986, %v963, %v984
    %v1001 = vrot.slane %v999, 4
    %vm1003 = vcmp.gt.f32.partialorder %v963, %v1001
    %v1005 = vrot.slane %v990, 4
    %v1007 = vsel %vm1003, %v951, %v1005
    %v1009 = vrot.slane %v994, 4
    %v1011 = vsel %vm1003, %v955, %v1009
    %v1013 = vrot.slane %v998, 4
    %v1015 = vsel %vm1003, %v959, %v1013
    %v1016 = vsel %vm1003, %v963, %v1001
    %v1018 = vrot.slane %v1016, 4
    %vm1020 = vcmp.gt.f32.partialorder %v964, %v1018
    %v1022 = vrot.slane %v1007, 4
    %v1024 = vsel %vm1020, %v952, %v1022
    %v1026 = vrot.slane %v1011, 4
    %v1028 = vsel %vm1020, %v956, %v1026
    %v1030 = vrot.slane %v1015, 4
    %v1032 = vsel %vm1020, %v960, %v1030
    %v1033 = vsel %vm1020, %v964, %v1018
    %v1035 = vrot.slane %v1033, 4
    %vm1037 = vcmp.gt.f32.partialorder %v964, %v1035
    %v1039 = vrot.slane %v1024, 4
    %v1041 = vsel %vm1037, %v952, %v1039
    %v1043 = vrot.slane %v1028, 4
    %v1045 = vsel %vm1037, %v956, %v1043
    %v1047 = vrot.slane %v1032, 4
    %v1049 = vsel %vm1037, %v960, %v1047
    %v1050 = vsel %vm1037, %v964, %v1035
    %v1052 = vrot.slane %v1050, 4
    %vm1054 = vcmp.gt.f32.partialorder %v965, %v1052
    %v1056 = vrot.slane %v1041, 4
    %v1058 = vsel %vm1054, %v953, %v1056
    %v1060 = vrot.slane %v1045, 4
    %v1062 = vsel %vm1054, %v957, %v1060
    %v1064 = vrot.slane %v1049, 4
    %v1066 = vsel %vm1054, %v961, %v1064
    %v1067 = vsel %vm1054, %v965, %v1052
    %v1069 = vrot.slane %v1067, 4
    %vm1071 = vcmp.gt.f32.partialorder %v965, %v1069
    %v1073 = vrot.slane %v1058, 4
    %v1075 = vsel %vm1071, %v953, %v1073
    %v1077 = vrot.slane %v1062, 4
    %v1079 = vsel %vm1071, %v957, %v1077
    %v1081 = vrot.slane %v1066, 4
    %v1083 = vsel %vm1071, %v961, %v1081
    %v1084 = vsel %vm1071, %v965, %v1069
    %vm1085 = vcmp.gt.f32.partialorder %v1084, 0.0
    %v1086 = vsel %vm1085, %v1084, 1.0
    %v1087 = vrcp.pop %v1086
    %v1088 = vmul.f32 %v1075, %v1087
    %v1089 = vmul.f32 %v1079, %v1087
    %v1090 = vmul.f32 %v1083, %v1087
    %v1092 = vrot.slane %v1088, 4
    %v1095 = vrot.slane %v1090, 4
    %vm1096 = vcmask 1043456
    %v1097 = vsel %vm1096, %v1092, %v1089
    %v1098 = vld [vmem:[%s3] sm:$0xf]
    %v1100 = vsel %vm774, %v1097, 0
    %v1102 = vsel %vm774, %v1095, 0
    %v1105 = vsel %vm1096, %v1098, 0
    %1107 = vmatprep.subr.mxu0 0.0
    %1108 = vmatpush1.msra.mxu0 %v1105
    %1109 = vmatprep.subr.mxu0 0.0
    %1110 = vmatpush1.msra.mxu0 0.0
    %1111 = vmatprep.subr.mxu0 0.0
    %1112 = vmatpush1.msra.mxu0 0.0
    %1113 = vmatprep.subr.mxu0 0.0
    %1114 = vmatpush1.msra.mxu0 0.0
    %1115 = vmatprep.subr.mxu0 0.0
    %1116 = vmatpush1.msra.mxu0 0.0
    %1117 = vmatprep.subr.mxu0 0.0
    %1118 = vmatpush1.msra.mxu0 0.0
    %1119 = vmatprep.subr.mxu0 0.0
    %1120 = vmatpush1.msra.mxu0 0.0
    %1121 = vmatprep.subr.mxu0 0.0
    %1122 = vmatpush1.msra.mxu0 0.0
    %1123 = vmatprep.subr.mxu0 0.0
    %1124 = vmatpush1.msra.mxu0 0.0
    %1125 = vmatprep.subr.mxu0 0.0
    %1126 = vmatpush1.msra.mxu0 0.0
    %1127 = vmatprep.subr.mxu0 0.0
    %1128 = vmatpush1.msra.mxu0 0.0
    %1129 = vmatprep.subr.mxu0 0.0
    %1130 = vmatpush1.msra.mxu0 0.0
    %1131 = vmatprep.subr.mxu0 0.0
    %1132 = vmatpush1.msra.mxu0 0.0
    %1133 = vmatprep.subr.mxu0 0.0
    %1134 = vmatpush1.msra.mxu0 0.0
    %1135 = vmatprep.subr.mxu0 0.0
    %1136 = vmatpush1.msra.mxu0 0.0
    %1137 = vmatprep.subr.mxu0 0.0
    %1138 = vmatpush1.msra.mxu0 0.0
    %1139 = vmatprep.subr.mxu0 0.0
    %1140 = vmatpush1.msra.mxu0 0.0
    %1141 = vmatprep.subr.mxu0 0.0
    %1142 = vmatpush1.msra.mxu0 0.0
    %1143 = vmatprep.subr.mxu0 0.0
    %1144 = vmatpush1.msra.mxu0 0.0
    %1145 = vmatprep.subr.mxu0 0.0
    %1146 = vmatpush1.msra.mxu0 0.0
    %1147 = vmatprep.subr.mxu0 0.0
    %1148 = vmatpush1.msra.mxu0 0.0
    %1149 = vmatprep.subr.mxu0 0.0
    %1150 = vmatpush1.msra.mxu0 0.0
    %1151 = vmatprep.subr.mxu0 0.0
    %1152 = vmatpush1.msra.mxu0 0.0
    %1153 = vmatprep.subr.mxu0 0.0
    %1154 = vmatpush1.msra.mxu0 0.0
    %1155 = vmatprep.subr.mxu0 0.0
    %1156 = vmatpush1.msra.mxu0 0.0
    %1157 = vmatprep.subr.mxu0 0.0
    %1158 = vmatpush1.msra.mxu0 0.0
    %1159 = vmatprep.subr.mxu0 0.0
    %1160 = vmatpush1.msra.mxu0 0.0
    %1161 = vmatprep.subr.mxu0 0.0
    %1162 = vmatpush1.msra.mxu0 0.0
    %1163 = vmatprep.subr.mxu0 0.0
    %1164 = vmatpush1.msra.mxu0 0.0
    %1165 = vmatprep.subr.mxu0 0.0
    %1166 = vmatpush1.msra.mxu0 0.0
    %1167 = vmatprep.subr.mxu0 0.0
    %1168 = vmatpush1.msra.mxu0 0.0
    %1169 = vmatprep.subr.mxu0 0.0
    %1170 = vmatpush1.msra.mxu0 0.0
    %1171 = vmatprep.mubr.f32.mxu0 0.0
    %1172 = vmatmul.mubr.f32.gmra.mrb[0].mxu0 %v1100
    %v1173 = vpop.f32.mrb[0].mxu0
    %v1174 = vadd.f32 0.0, %v1173
    %v1175 = vpop.f32.mrb[0].mxu0
    %1176 = vmatprep.mubr.f32.mxu0 0.0
    %1177 = vmatmul.mubr.f32.gmra.mrb[0].mxu0 %v1102
    %v1178 = vpop.f32.mrb[0].mxu0
    %v1179 = vadd.f32 0.0, %v1178
    %v1180 = vpop.f32.mrb[0].mxu0
    %1181 = vdwg.mxu0
    %v1182 = vld [vmem:[%s2] sm:$0xff]
    %v1183 = vld [vmem:[%s2 + $0x8] sm:$0xff]
    %v1184 = vld [vmem:[%s2 + $0x10] sm:$0xff]
    %v1185 = vld [vmem:[%s2 + $0x18] sm:$0xff]
    %v1186 = vld [vmem:[%s2 + $0x20] sm:$0xff]
    %v1187 = vld [vmem:[%s2 + $0x28] sm:$0xff]
    %vm1188 = vcmask 97280
    %v1190 = vsel %vm1188, %v1182, 0
    %v1193 = vsel %vm1188, %v1183, 0
    %v1196 = vsel %vm1188, %v1184, 0
    %v1199 = vsel %vm1188, %v1185, 0
    %v1202 = vsel %vm1188, %v1186, 0
    %v1205 = vsel %vm1188, %v1187, 0
    %v1208 = vsel %vm1096, %v1179, 0
    %1210 = vmatprep.subr.mxu0 0.0
    %1211 = vmatpush1.msra.mxu0 %v1174
    %1212 = vmatprep.subr.mxu0 0.0
    %1213 = vmatpush1.msra.mxu0 %v1208
    %1214 = vmatprep.subr.mxu0 0.0
    %1215 = vmatpush1.msra.mxu0 0.0
    %1216 = vmatprep.subr.mxu0 0.0
    %1217 = vmatpush1.msra.mxu0 0.0
    %1218 = vmatprep.subr.mxu0 0.0
    %1219 = vmatpush1.msra.mxu0 0.0
    %1220 = vmatprep.subr.mxu0 0.0
    %1221 = vmatpush1.msra.mxu0 0.0
    %1222 = vmatprep.subr.mxu0 0.0
    %1223 = vmatpush1.msra.mxu0 0.0
    %1224 = vmatprep.subr.mxu0 0.0
    %1225 = vmatpush1.msra.mxu0 0.0
    %1226 = vmatprep.subr.mxu0 0.0
    %1227 = vmatpush1.msra.mxu0 0.0
    %1228 = vmatprep.subr.mxu0 0.0
    %1229 = vmatpush1.msra.mxu0 0.0
    %1230 = vmatprep.subr.mxu0 0.0
    %1231 = vmatpush1.msra.mxu0 0.0
    %1232 = vmatprep.subr.mxu0 0.0
    %1233 = vmatpush1.msra.mxu0 0.0
    %1234 = vmatprep.subr.mxu0 0.0
    %1235 = vmatpush1.msra.mxu0 0.0
    %1236 = vmatprep.subr.mxu0 0.0
    %1237 = vmatpush1.msra.mxu0 0.0
    %1238 = vmatprep.subr.mxu0 0.0
    %1239 = vmatpush1.msra.mxu0 0.0
    %1240 = vmatprep.subr.mxu0 0.0
    %1241 = vmatpush1.msra.mxu0 0.0
    %1242 = vmatprep.subr.mxu0 0.0
    %1243 = vmatpush1.msra.mxu0 0.0
    %1244 = vmatprep.subr.mxu0 0.0
    %1245 = vmatpush1.msra.mxu0 0.0
    %1246 = vmatprep.subr.mxu0 0.0
    %1247 = vmatpush1.msra.mxu0 0.0
    %1248 = vmatprep.subr.mxu0 0.0
    %1249 = vmatpush1.msra.mxu0 0.0
    %1250 = vmatprep.subr.mxu0 0.0
    %1251 = vmatpush1.msra.mxu0 0.0
    %1252 = vmatprep.subr.mxu0 0.0
    %1253 = vmatpush1.msra.mxu0 0.0
    %1254 = vmatprep.subr.mxu0 0.0
    %1255 = vmatpush1.msra.mxu0 0.0
    %1256 = vmatprep.subr.mxu0 0.0
    %1257 = vmatpush1.msra.mxu0 0.0
    %1258 = vmatprep.subr.mxu0 0.0
    %1259 = vmatpush1.msra.mxu0 0.0
    %1260 = vmatprep.subr.mxu0 0.0
    %1261 = vmatpush1.msra.mxu0 0.0
    %1262 = vmatprep.subr.mxu0 0.0
    %1263 = vmatpush1.msra.mxu0 0.0
    %1264 = vmatprep.subr.mxu0 0.0
    %1265 = vmatpush1.msra.mxu0 0.0
    %1266 = vmatprep.subr.mxu0 0.0
    %1267 = vmatpush1.msra.mxu0 0.0
    %1268 = vmatprep.subr.mxu0 0.0
    %1269 = vmatpush1.msra.mxu0 0.0
    %1270 = vmatprep.subr.mxu0 0.0
    %1271 = vmatpush1.msra.mxu0 0.0
    %1272 = vmatprep.subr.mxu0 0.0
    %1273 = vmatpush1.msra.mxu0 0.0
    %1274 = vmatprep.mubr.f32.mxu0 0.0
    %1275 = vmatmul.mubr.f32.gmra.mrb[0].mxu0 %v1190
    %v1276 = vpop.f32.mrb[0].mxu0
    %v1277 = vadd.f32 0.0, %v1276
    %v1278 = vpop.f32.mrb[0].mxu0
    %1279 = vmatprep.mubr.f32.mxu0 0.0
    %1280 = vmatmul.mubr.f32.gmra.mrb[0].mxu0 %v1193
    %v1281 = vpop.f32.mrb[0].mxu0
    %v1282 = vadd.f32 0.0, %v1281
    %v1283 = vpop.f32.mrb[0].mxu0
    %1284 = vmatprep.mubr.f32.mxu0 0.0
    %1285 = vmatmul.mubr.f32.gmra.mrb[0].mxu0 %v1196
    %v1286 = vpop.f32.mrb[0].mxu0
    %v1287 = vadd.f32 0.0, %v1286
    %v1288 = vpop.f32.mrb[0].mxu0
    %1289 = vmatprep.mubr.f32.mxu0 0.0
    %1290 = vmatmul.mubr.f32.gmra.mrb[0].mxu0 %v1199
    %v1291 = vpop.f32.mrb[0].mxu0
    %v1292 = vadd.f32 0.0, %v1291
    %v1293 = vpop.f32.mrb[0].mxu0
    %1294 = vmatprep.mubr.f32.mxu0 0.0
    %1295 = vmatmul.mubr.f32.gmra.mrb[0].mxu0 %v1202
    %v1296 = vpop.f32.mrb[0].mxu0
    %v1297 = vadd.f32 0.0, %v1296
    %v1298 = vpop.f32.mrb[0].mxu0
    %1299 = vmatprep.mubr.f32.mxu0 0.0
    %1300 = vmatmul.mubr.f32.gmra.mrb[0].mxu0 %v1205
    %v1301 = vpop.f32.mrb[0].mxu0
    %v1302 = vadd.f32 0.0, %v1301
    %v1303 = vpop.f32.mrb[0].mxu0
    %1304 = vdwg.mxu0
    %1305 = vst [vmem:[#allocation4] sm:$0xff] %v1277
    %1306 = vst [vmem:[#allocation4 + $0x8] sm:$0xff] %v1282
    %1307 = vst [vmem:[#allocation4 + $0x10] sm:$0xff] %v1287
    %1308 = vst [vmem:[#allocation4 + $0x18] sm:$0xff] %v1292
    %1309 = vst [vmem:[#allocation4 + $0x20] sm:$0xff] %v1297
    %1310 = vst [vmem:[#allocation4 + $0x28] sm:$0xff] %v1302
    // Predicated region
    $region56: #{tpu_custom_call.1} parent=1 // pred_check
      _
    $region57: #{tpu_custom_call.1} parent=1 // pred_check_branch
      %1312 = sbr.rel (0) target = $region59
    $region58: #{tpu_custom_call.1} parent=1 // pred_region
      %s1314 = ssub.s32 768, 768
      %1315 = vsyncadd [#allocation5], %s1314
      %s1316 = sshll.u32 [#allocation4], 4
      %s1317 = int_to_ptr.vmem [resolvable:$true] %s1316
      %1322 = dma.vmem_to_hbm [thread:$0]  %s1317, 768, %s4, [#allocation5], 128, 128, 8
    $region59: #{tpu_custom_call.1} parent=1 // pred_fallthru
      _
    // Predicated region
    $region60: #{tpu_custom_call.1} parent=1 // pred_check
      _
    $region61: #{tpu_custom_call.1} parent=1 // pred_check_branch
      %1324 = sbr.rel (0) target = $region63
    $region62: #{tpu_custom_call.1} parent=1 // pred_region
      %1325 = dma.done [#allocation5], 768
    $region63: #{tpu_custom_call.1} parent=1 // pred_fallthru
      _
    %1326 = vsyncpa [#allocation5], 1

</llo_original>
